<compile_context>
chip_gen: v7x
topology: tpu7x:2x2x1
jax: 0.10.0
libtpu: 0.0.40
codegen_flags: <defaults>
</compile_context>

<pallas_src>
import functools

import jax
import jax.numpy as jnp
from jax import lax
from jax.experimental import pallas as pl
from jax.experimental.pallas import tpu as pltpu

HIDDEN = 64            # nn.LSTM(embed_dim, 64, bidirectional=True)
GATE_ORDER = "ifog"    # fused lane-block order (PyTorch weight order is i,f,g,o)


# ------------------------------- fused kernel -------------------------------

def fused_model_kernel(ids_ref, emb_ref, win_ref, bin_ref, whh_ref,
                       fcw_ref, fcb_ref, w2f_ref, w2b_ref, fc2b_ref,
                       x1_ref, x2_ref, *, T, B):
    """Fused embedding + fc-mean + bidirectional LSTM + fc2/log_softmax.

    ids:  (T*B, 1) int32, t-major row order (row = t*B + b)
    emb:  (vocab, E) embedding table
    win:  (E, 8H) merged input->gate weights, lane blocks
          [i_f i_b | f_f f_b | o_f o_b | g_f g_b]
    bin:  (1, 8H) fused biases (ih + hh) in the same layout
    whh:  (2H, 8H) bf16 block-structured recurrent weights
          (rows 0:H -> fwd lanes, rows H:2H -> bwd lanes)
    fcw/fcb:   (E, num_class), (1, num_class)
    w2f/w2b:   (2H, num_tags) fwd/bwd zero-padded halves of fc2, fc2b (1, num_tags)
    Outputs: x1 (B, num_class);  x2 (T*B, num_tags) t-major.
    """
    H = HIDDEN
    H2 = 2 * H                 # fused hidden width  [fwd | bwd]
    G = 8 * H                  # fused gate width
    TB = T * B
    V = emb_ref.shape[0]

    # ---- fused embedding lookup: one-hot x table on the MXU ----
    ids = ids_ref[...]                                          # (TB, 1) int32
    col = lax.broadcasted_iota(jnp.int32, (TB, V), 1)
    onehot = (col == ids).astype(jnp.float32)                   # (TB, V)
    x = jnp.dot(onehot, emb_ref[...],
                preferred_element_type=jnp.float32)              # (TB, E)

    # ---- branch 1: x1 = mean_t(fc(x)) == fc(mean_t(x)) ----
    xsum = x[0:B]
    for s in range(1, T):
        xsum = xsum + x[s * B:(s + 1) * B]
    xm = xsum * (1.0 / T)                                        # (B, E)
    x1_ref[...] = (jnp.dot(xm, fcw_ref[...],
                           preferred_element_type=jnp.float32) + fcb_ref[...])

    # ---- hoisted merged input projection (both directions, bias folded) ----
    xp = (jnp.dot(x, win_ref[...],
                  preferred_element_type=jnp.float32) + bin_ref[...])  # (TB, G)

    # forward-direction lanes = first 64 of every 128-lane gate block
    lane = lax.broadcasted_iota(jnp.int32, (1, G), 1)
    fwd_lanes = (lane % H2) < H

    # per-step pre-activations: fwd lanes read time s, bwd lanes read T-1-s.
    # Independent of h/c -> the scheduler can hoist them off the serial path.
    pre = []
    for s in range(T):
        xp_fwd = xp[s * B:(s + 1) * B]
        xp_bwd = xp[(T - 1 - s) * B:(T - s) * B]
        pre.append(jnp.where(fwd_lanes, xp_fwd, xp_bwd))

    whh = whh_ref[...]                                           # (2H, G) bf16
    h = jnp.zeros((B, H2), jnp.float32)                          # [h_fwd | h_bwd]
    c = jnp.zeros((B, H2), jnp.float32)

    # ---- fully unrolled fused recurrence (fwd consumes s, bwd consumes T-1-s)
    h_steps = []
    for s in range(T):
        gates = pre[s] + jnp.dot(h.astype(jnp.bfloat16), whh,
                                 preferred_element_type=jnp.float32)   # (B, G)
        sig = jax.nn.sigmoid(gates[:, 0:3 * H2])     # [i | f | o] one EUP region
        i = sig[:, 0:H2]
        f = sig[:, H2:2 * H2]
        o = sig[:, 2 * H2:3 * H2]
        g = jnp.tanh(gates[:, 3 * H2:4 * H2])
        c = f * c + i * g
        h = o * jnp.tanh(c)
        h_steps.append(h)                            # [h_fwd(s) | h_bwd(T-1-s)]

    # ---- fc2 + log_softmax on a flat (T*B, tags) slab ----
    hf = jnp.concatenate([h_steps[t] for t in range(T)], axis=0)         # fwd half valid @ t
    hb = jnp.concatenate([h_steps[T - 1 - t] for t in range(T)], axis=0) # bwd half valid @ t
    z = (jnp.dot(hf, w2f_ref[...], preferred_element_type=jnp.float32)
         + jnp.dot(hb, w2b_ref[...], preferred_element_type=jnp.float32)
         + fc2b_ref[...])                                                # (TB, tags)
    m = jnp.max(z, axis=-1, keepdims=True)
    e = jnp.exp(z - m)
    x2_ref[...] = (z - m) - jnp.log(jnp.sum(e, axis=-1, keepdims=True))


# --------------------------- one-time weight packing --------------------------

def prepare_params(params):
    """Repack PyTorch-layout weights into the fused kernel layout ONCE at init
    (hoisted out of the per-call jit path)."""
    H = HIDDEN

    def gate_blocks(w):                      # (4H, K) torch layout -> {gate: (K, H)}
        wt = w.T
        return {g: wt[:, gi * H:(gi + 1) * H] for gi, g in enumerate("ifgo")}

    def bias_blocks(b):
        return {g: b[gi * H:(gi + 1) * H] for gi, g in enumerate("ifgo")}

    wihf, wihb = gate_blocks(params["lstm_w_ih_f"]), gate_blocks(params["lstm_w_ih_b"])
    whhf, whhb = gate_blocks(params["lstm_w_hh_f"]), gate_blocks(params["lstm_w_hh_b"])
    bf = bias_blocks(params["lstm_b_ih_f"] + params["lstm_b_hh_f"])
    bb = bias_blocks(params["lstm_b_ih_b"] + params["lstm_b_hh_b"])

    # merged dense input projection: (E, 8H), per-gate lane blocks [g_f | g_b]
    w_in = jnp.concatenate(
        [jnp.concatenate([wihf[g], wihb[g]], axis=1) for g in GATE_ORDER], axis=1)
    b_in = jnp.concatenate(
        [jnp.concatenate([bf[g], bb[g]], axis=0) for g in GATE_ORDER], axis=0
    ).reshape(1, 8 * H)

    # block-structured recurrent weights, stored bf16 (serial critical path)
    zH = jnp.zeros((H, H), jnp.float32)
    top = jnp.concatenate(
        [jnp.concatenate([whhf[g], zH], axis=1) for g in GATE_ORDER], axis=1)
    bot = jnp.concatenate(
        [jnp.concatenate([zH, whhb[g]], axis=1) for g in GATE_ORDER], axis=1)
    whh = jnp.concatenate([top, bot], axis=0).astype(jnp.bfloat16)   # (2H, 8H)

    fc2wt = params["fc2_w"].T                                        # (2H, tags)
    tags = fc2wt.shape[1]
    zT = jnp.zeros((H, tags), jnp.float32)
    w2f = jnp.concatenate([fc2wt[:H], zT], axis=0)                   # fwd half
    w2b = jnp.concatenate([zT, fc2wt[H:]], axis=0)                   # bwd half

    return {
        "emb": params["embedding"],
        "w_in": w_in, "b_in": b_in, "whh": whh,
        "fcw": params["fc_w"].T, "fcb": params["fc_b"].reshape(1, -1),
        "w2f": w2f, "w2b": w2b, "fc2b": params["fc2_b"].reshape(1, -1),
    }


# ------------------------------- JAX wrapper ---------------------------------

def _vmem():
    return pl.BlockSpec(memory_space=pltpu.MemorySpace.VMEM)


@jax.jit
def model_forward(packed, text):
    B, T = text.shape
    num_class = packed["fcw"].shape[1]
    num_tags = packed["w2f"].shape[1]

    # t-major flat indices so the recurrence works on static (B, .) row blocks.
    ids = text.T.reshape(T * B, 1).astype(jnp.int32)

    kernel = functools.partial(fused_model_kernel, T=T, B=B)
    x1, x2_flat = pl.pallas_call(
        kernel,
        out_shape=(jax.ShapeDtypeStruct((B, num_class), jnp.float32),
                   jax.ShapeDtypeStruct((T * B, num_tags), jnp.float32)),
        in_specs=[_vmem()] * 10,
        out_specs=(_vmem(), _vmem()),
    )(ids, packed["emb"], packed["w_in"], packed["b_in"], packed["whh"],
      packed["fcw"], packed["fcb"], packed["w2f"], packed["w2b"], packed["fc2b"])

    # (T*B, tags) t-major -> PyTorch's batch-first (B*T, tags) row order; tiny.
    x2 = x2_flat.reshape(T, B, num_tags).transpose(1, 0, 2).reshape(B * T, num_tags)
    return x1, x2


# ----------------------------- pure-JAX reference ----------------------------

def reference_forward(params, text):
    x = jnp.take(params["embedding"], text, axis=0)
    x1 = jnp.mean(x @ params["fc_w"].T + params["fc_b"], axis=1)

    def run_dir(xs, wih, whh, b):
        def step(carry, xt):
            h, c = carry
            gates = xt @ wih.T + h @ whh.T + b
            i = jax.nn.sigmoid(gates[:, :HIDDEN])
            f = jax.nn.sigmoid(gates[:, HIDDEN:2 * HIDDEN])
            g = jnp.tanh(gates[:, 2 * HIDDEN:3 * HIDDEN])
            o = jax.nn.sigmoid(gates[:, 3 * HIDDEN:])
            c = f * c + i * g
            h = o * jnp.tanh(c)
            return (h, c), h
        B = xs.shape[1]
        init = (jnp.zeros((B, HIDDEN)), jnp.zeros((B, HIDDEN)))
        _, hs = lax.scan(step, init, xs)
        return hs

    xt = jnp.transpose(x, (1, 0, 2))
    bf = params["lstm_b_ih_f"] + params["lstm_b_hh_f"]
    bb = params["lstm_b_ih_b"] + params["lstm_b_hh_b"]
    hf = run_dir(xt, params["lstm_w_ih_f"], params["lstm_w_hh_f"], bf)
    hb = run_dir(xt[::-1], params["lstm_w_ih_b"], params["lstm_w_hh_b"], bb)[::-1]
    h = jnp.concatenate([hf, hb], axis=-1)
    h = jnp.transpose(h, (1, 0, 2)).reshape(-1, 2 * HIDDEN)
    z = h @ params["fc2_w"].T + params["fc2_b"]
    x2 = jax.nn.log_softmax(z, axis=1)
    return x1, x2


# ----------------------------------- main ------------------------------------

def init_params(key, vocab_size, embed_dim, num_class, num_tags):
    ks = jax.random.split(key, 12)
    n = lambda k, shape, s=0.1: (jax.random.normal(k, shape, jnp.float32) * s)
    return {
        "embedding":   n(ks[0], (vocab_size, embed_dim), 1.0),
        "fc_w":        n(ks[1], (num_class, embed_dim)),
        "fc_b":        n(ks[2], (num_class,)),
        "lstm_w_ih_f": n(ks[3], (4 * HIDDEN, embed_dim)),
        "lstm_w_hh_f": n(ks[4], (4 * HIDDEN, HIDDEN)),
        "lstm_b_ih_f": n(ks[5], (4 * HIDDEN,)),
        "lstm_b_hh_f": n(ks[6], (4 * HIDDEN,)),
        "lstm_w_ih_b": n(ks[7], (4 * HIDDEN, embed_dim)),
        "lstm_w_hh_b": n(ks[8], (4 * HIDDEN, HIDDEN)),
        "lstm_b_ih_b": n(ks[9], (4 * HIDDEN,)),
        "lstm_b_hh_b": n(ks[10], (4 * HIDDEN,)),
        "fc2_w":       n(ks[11], (num_tags, 2 * HIDDEN)),
        "fc2_b":       jnp.zeros((num_tags,), jnp.float32),
    }


if __name__ == "__main__":
    vocab_size, embed_dim, num_class, num_tags = 50, 32, 4, 3
    B, T = 2, 8

    key = jax.random.PRNGKey(0)
    kp, kt = jax.random.split(key)
    params = init_params(kp, vocab_size, embed_dim, num_class, num_tags)
    text = jax.random.randint(kt, (B, T), 0, vocab_size, dtype=jnp.int32)

    packed = prepare_params(params)          # one-time packing, outside the jit path

    x1, x2 = model_forward(packed, text)
    jax.block_until_ready((x1, x2))

    r1, r2 = reference_forward(params, text)
    assert x1.shape == (B, num_class) and x2.shape == (B * T, num_tags)
    assert jnp.allclose(x1, r1, atol=1e-3, rtol=1e-3)
    # bf16 operands on the serial recurrent matmul (f32 accumulation) give a
    # few e-3 of drift vs. the pure-f32 reference.
    assert jnp.allclose(x2, r2, atol=2e-2, rtol=2e-2)

    print("KERNEL_OK")
</pallas_src>

<mosaic_0001>
module attributes {stable_mosaic.version = 11 : i64} {
  func.func @fused_model_kernel(%arg0: memref<16x1xi32, #tpu.memory_space<vmem>>, %arg1: memref<50x32xf32, #tpu.memory_space<vmem>>, %arg2: memref<32x512xf32, #tpu.memory_space<vmem>>, %arg3: memref<1x512xf32, #tpu.memory_space<vmem>>, %arg4: memref<128x512xbf16, #tpu.memory_space<vmem>>, %arg5: memref<32x4xf32, #tpu.memory_space<vmem>>, %arg6: memref<1x4xf32, #tpu.memory_space<vmem>>, %arg7: memref<128x3xf32, #tpu.memory_space<vmem>>, %arg8: memref<128x3xf32, #tpu.memory_space<vmem>>, %arg9: memref<1x3xf32, #tpu.memory_space<vmem>>, %arg10: memref<2x4xf32, #tpu.memory_space<vmem>>, %arg11: memref<16x3xf32, #tpu.memory_space<vmem>>) attributes {dimension_semantics = [], scalar_prefetch = 0 : i64, scratch_operands = 0 : i64, tpu.core_type = #tpu.core_type<tc>} {
    %c0 = arith.constant 0 : index
    %c0_0 = arith.constant 0 : index
    %0 = vector.load %arg0[%c0, %c0_0] : memref<16x1xi32, #tpu.memory_space<vmem>>, vector<16x1xi32>
    %1 = tpu.iota {dimensions = array<i32: 1>} : vector<16x50xi32>
    %2 = vector.broadcast %0 : vector<16x1xi32> to vector<16x50xi32>
    %3 = arith.cmpi eq, %1, %2 : vector<16x50xi32>
    %4 = arith.extui %3 : vector<16x50xi1> to vector<16x50xi32>
    %5 = arith.sitofp %4 : vector<16x50xi32> to vector<16x50xf32>
    %c0_1 = arith.constant 0 : index
    %c0_2 = arith.constant 0 : index
    %6 = vector.load %arg1[%c0_1, %c0_2] : memref<50x32xf32, #tpu.memory_space<vmem>>, vector<50x32xf32>
    %cst = arith.constant dense<0.000000e+00> : vector<16x32xf32>
    %7 = tpu.matmul %5, %6, %cst {dimension_numbers = #tpu.dot_dimension_numbers<[1], [0], [0], [1], [0, 0, 1, 1], [], []>} : vector<16x50xf32>, vector<50x32xf32>, vector<16x32xf32> -> vector<16x32xf32>
    %8 = vector.extract_strided_slice %7 {offsets = [0, 0], sizes = [2, 32], strides = [1, 1]} : vector<16x32xf32> to vector<2x32xf32>
    %9 = vector.extract_strided_slice %7 {offsets = [2, 0], sizes = [2, 32], strides = [1, 1]} : vector<16x32xf32> to vector<2x32xf32>
    %10 = arith.addf %8, %9 : vector<2x32xf32>
    %11 = vector.extract_strided_slice %7 {offsets = [4, 0], sizes = [2, 32], strides = [1, 1]} : vector<16x32xf32> to vector<2x32xf32>
    %12 = arith.addf %10, %11 : vector<2x32xf32>
    %13 = vector.extract_strided_slice %7 {offsets = [6, 0], sizes = [2, 32], strides = [1, 1]} : vector<16x32xf32> to vector<2x32xf32>
    %14 = arith.addf %12, %13 : vector<2x32xf32>
    %15 = vector.extract_strided_slice %7 {offsets = [8, 0], sizes = [2, 32], strides = [1, 1]} : vector<16x32xf32> to vector<2x32xf32>
    %16 = arith.addf %14, %15 : vector<2x32xf32>
    %17 = vector.extract_strided_slice %7 {offsets = [10, 0], sizes = [2, 32], strides = [1, 1]} : vector<16x32xf32> to vector<2x32xf32>
    %18 = arith.addf %16, %17 : vector<2x32xf32>
    %19 = vector.extract_strided_slice %7 {offsets = [12, 0], sizes = [2, 32], strides = [1, 1]} : vector<16x32xf32> to vector<2x32xf32>
    %20 = arith.addf %18, %19 : vector<2x32xf32>
    %21 = vector.extract_strided_slice %7 {offsets = [14, 0], sizes = [2, 32], strides = [1, 1]} : vector<16x32xf32> to vector<2x32xf32>
    %22 = arith.addf %20, %21 : vector<2x32xf32>
    %cst_3 = arith.constant 1.250000e-01 : f32
    %23 = vector.broadcast %cst_3 : f32 to vector<2x32xf32>
    %24 = arith.mulf %22, %23 : vector<2x32xf32>
    %c0_4 = arith.constant 0 : index
    %c0_5 = arith.constant 0 : index
    %25 = vector.load %arg5[%c0_4, %c0_5] : memref<32x4xf32, #tpu.memory_space<vmem>>, vector<32x4xf32>
    %cst_6 = arith.constant dense<0.000000e+00> : vector<2x4xf32>
    %26 = tpu.matmul %24, %25, %cst_6 {dimension_numbers = #tpu.dot_dimension_numbers<[1], [0], [0], [1], [0, 0, 1, 1], [], []>} : vector<2x32xf32>, vector<32x4xf32>, vector<2x4xf32> -> vector<2x4xf32>
    %c0_7 = arith.constant 0 : index
    %c0_8 = arith.constant 0 : index
    %27 = vector.load %arg6[%c0_7, %c0_8] : memref<1x4xf32, #tpu.memory_space<vmem>>, vector<1x4xf32>
    %28 = vector.broadcast %27 : vector<1x4xf32> to vector<2x4xf32>
    %29 = arith.addf %26, %28 : vector<2x4xf32>
    %c0_9 = arith.constant 0 : index
    %c0_10 = arith.constant 0 : index
    %30 = vector.load %arg10[%c0_9, %c0_10] : memref<2x4xf32, #tpu.memory_space<vmem>>, vector<2x4xf32>
    tpu.vector_store %arg10[%c0_9, %c0_10], %29 {strides = array<i32>} : memref<2x4xf32, #tpu.memory_space<vmem>>, vector<2x4xf32>,
    %c0_11 = arith.constant 0 : index
    %c0_12 = arith.constant 0 : index
    %31 = vector.load %arg2[%c0_11, %c0_12] : memref<32x512xf32, #tpu.memory_space<vmem>>, vector<32x512xf32>
    %cst_13 = arith.constant dense<0.000000e+00> : vector<16x512xf32>
    %32 = tpu.matmul %7, %31, %cst_13 {dimension_numbers = #tpu.dot_dimension_numbers<[1], [0], [0], [1], [0, 0, 1, 1], [], []>} : vector<16x32xf32>, vector<32x512xf32>, vector<16x512xf32> -> vector<16x512xf32>
    %c0_14 = arith.constant 0 : index
    %c0_15 = arith.constant 0 : index
    %33 = vector.load %arg3[%c0_14, %c0_15] : memref<1x512xf32, #tpu.memory_space<vmem>>, vector<1x512xf32>
    %34 = vector.broadcast %33 : vector<1x512xf32> to vector<16x512xf32>
    %35 = arith.addf %32, %34 : vector<16x512xf32>
    %36 = tpu.iota {dimensions = array<i32: 1>} : vector<1x512xi32>
    %c128_i32 = arith.constant 128 : i32
    %c0_i32 = arith.constant 0 : i32
    %37 = arith.cmpi eq, %c128_i32, %c0_i32 : i32
    %c1_i32 = arith.constant 1 : i32
    %38 = arith.select %37, %c1_i32, %c128_i32 : i32
    %39 = vector.broadcast %38 : i32 to vector<1x512xi32>
    %40 = arith.remsi %36, %39 : vector<1x512xi32>
    %c0_i32_16 = arith.constant 0 : i32
    %41 = vector.broadcast %c0_i32_16 : i32 to vector<1x512xi32>
    %42 = arith.cmpi ne, %40, %41 : vector<1x512xi32>
    %c0_i32_17 = arith.constant 0 : i32
    %43 = vector.broadcast %c0_i32_17 : i32 to vector<1x512xi32>
    %44 = arith.cmpi slt, %40, %43 : vector<1x512xi32>
    %c0_i32_18 = arith.constant 0 : i32
    %45 = arith.cmpi slt, %38, %c0_i32_18 : i32
    %46 = vector.broadcast %45 : i1 to vector<1x512xi1>
    %47 = vector.broadcast %46 : vector<1x512xi1> to vector<1x512xi1>
    %48 = arith.xori %44, %47 : vector<1x512xi1>
    %49 = arith.andi %48, %42 : vector<1x512xi1>
    %50 = vector.broadcast %38 : i32 to vector<1x512xi32>
    %51 = arith.addi %40, %50 : vector<1x512xi32>
    %52 = arith.select %49, %51, %40 : vector<1x512xi1>, vector<1x512xi32>
    %c64_i32 = arith.constant 64 : i32
    %53 = vector.broadcast %c64_i32 : i32 to vector<1x512xi32>
    %54 = arith.cmpi slt, %52, %53 : vector<1x512xi32>
    %55 = vector.extract_strided_slice %35 {offsets = [0, 0], sizes = [2, 512], strides = [1, 1]} : vector<16x512xf32> to vector<2x512xf32>
    %56 = vector.extract_strided_slice %35 {offsets = [14, 0], sizes = [2, 512], strides = [1, 1]} : vector<16x512xf32> to vector<2x512xf32>
    %57 = vector.shape_cast %54 : vector<1x512xi1> to vector<1x512xi1>
    %58 = vector.broadcast %57 : vector<1x512xi1> to vector<2x512xi1>
    %59 = arith.select %58, %55, %56 : vector<2x512xi1>, vector<2x512xf32>
    %60 = vector.extract_strided_slice %35 {offsets = [2, 0], sizes = [2, 512], strides = [1, 1]} : vector<16x512xf32> to vector<2x512xf32>
    %61 = vector.extract_strided_slice %35 {offsets = [12, 0], sizes = [2, 512], strides = [1, 1]} : vector<16x512xf32> to vector<2x512xf32>
    %62 = vector.shape_cast %54 : vector<1x512xi1> to vector<1x512xi1>
    %63 = vector.broadcast %62 : vector<1x512xi1> to vector<2x512xi1>
    %64 = arith.select %63, %60, %61 : vector<2x512xi1>, vector<2x512xf32>
    %65 = vector.extract_strided_slice %35 {offsets = [4, 0], sizes = [2, 512], strides = [1, 1]} : vector<16x512xf32> to vector<2x512xf32>
    %66 = vector.extract_strided_slice %35 {offsets = [10, 0], sizes = [2, 512], strides = [1, 1]} : vector<16x512xf32> to vector<2x512xf32>
    %67 = vector.shape_cast %54 : vector<1x512xi1> to vector<1x512xi1>
    %68 = vector.broadcast %67 : vector<1x512xi1> to vector<2x512xi1>
    %69 = arith.select %68, %65, %66 : vector<2x512xi1>, vector<2x512xf32>
    %70 = vector.extract_strided_slice %35 {offsets = [6, 0], sizes = [2, 512], strides = [1, 1]} : vector<16x512xf32> to vector<2x512xf32>
    %71 = vector.extract_strided_slice %35 {offsets = [8, 0], sizes = [2, 512], strides = [1, 1]} : vector<16x512xf32> to vector<2x512xf32>
    %72 = vector.shape_cast %54 : vector<1x512xi1> to vector<1x512xi1>
    %73 = vector.broadcast %72 : vector<1x512xi1> to vector<2x512xi1>
    %74 = arith.select %73, %70, %71 : vector<2x512xi1>, vector<2x512xf32>
    %75 = vector.extract_strided_slice %35 {offsets = [8, 0], sizes = [2, 512], strides = [1, 1]} : vector<16x512xf32> to vector<2x512xf32>
    %76 = vector.extract_strided_slice %35 {offsets = [6, 0], sizes = [2, 512], strides = [1, 1]} : vector<16x512xf32> to vector<2x512xf32>
    %77 = vector.shape_cast %54 : vector<1x512xi1> to vector<1x512xi1>
    %78 = vector.broadcast %77 : vector<1x512xi1> to vector<2x512xi1>
    %79 = arith.select %78, %75, %76 : vector<2x512xi1>, vector<2x512xf32>
    %80 = vector.extract_strided_slice %35 {offsets = [10, 0], sizes = [2, 512], strides = [1, 1]} : vector<16x512xf32> to vector<2x512xf32>
    %81 = vector.extract_strided_slice %35 {offsets = [4, 0], sizes = [2, 512], strides = [1, 1]} : vector<16x512xf32> to vector<2x512xf32>
    %82 = vector.shape_cast %54 : vector<1x512xi1> to vector<1x512xi1>
    %83 = vector.broadcast %82 : vector<1x512xi1> to vector<2x512xi1>
    %84 = arith.select %83, %80, %81 : vector<2x512xi1>, vector<2x512xf32>
    %85 = vector.extract_strided_slice %35 {offsets = [12, 0], sizes = [2, 512], strides = [1, 1]} : vector<16x512xf32> to vector<2x512xf32>
    %86 = vector.extract_strided_slice %35 {offsets = [2, 0], sizes = [2, 512], strides = [1, 1]} : vector<16x512xf32> to vector<2x512xf32>
    %87 = vector.shape_cast %54 : vector<1x512xi1> to vector<1x512xi1>
    %88 = vector.broadcast %87 : vector<1x512xi1> to vector<2x512xi1>
    %89 = arith.select %88, %85, %86 : vector<2x512xi1>, vector<2x512xf32>
    %90 = vector.extract_strided_slice %35 {offsets = [14, 0], sizes = [2, 512], strides = [1, 1]} : vector<16x512xf32> to vector<2x512xf32>
    %91 = vector.extract_strided_slice %35 {offsets = [0, 0], sizes = [2, 512], strides = [1, 1]} : vector<16x512xf32> to vector<2x512xf32>
    %92 = vector.shape_cast %54 : vector<1x512xi1> to vector<1x512xi1>
    %93 = vector.broadcast %92 : vector<1x512xi1> to vector<2x512xi1>
    %94 = arith.select %93, %90, %91 : vector<2x512xi1>, vector<2x512xf32>
    %c0_19 = arith.constant 0 : index
    %c0_20 = arith.constant 0 : index
    %95 = vector.load %arg4[%c0_19, %c0_20] : memref<128x512xbf16, #tpu.memory_space<vmem>>, vector<128x512xbf16>
    %cst_21 = arith.constant 0.000000e+00 : f32
    %96 = vector.broadcast %cst_21 : f32 to vector<2x128xf32>
    %cst_22 = arith.constant 0.000000e+00 : f32
    %97 = vector.broadcast %cst_22 : f32 to vector<2x128xf32>
    %98 = arith.truncf %96 : vector<2x128xf32> to vector<2x128xbf16>
    %cst_23 = arith.constant dense<0.000000e+00> : vector<2x512xf32>
    %99 = tpu.matmul %98, %95, %cst_23 {dimension_numbers = #tpu.dot_dimension_numbers<[1], [0], [0], [1], [0, 0, 1, 1], [], []>} : vector<2x128xbf16>, vector<128x512xbf16>, vector<2x512xf32> -> vector<2x512xf32>
    %100 = arith.addf %59, %99 : vector<2x512xf32>
    %101 = vector.extract_strided_slice %100 {offsets = [0, 0], sizes = [2, 384], strides = [1, 1]} : vector<2x512xf32> to vector<2x384xf32>
    %102 = arith.negf %101 : vector<2x384xf32>
    %103 = math.exp %102 : vector<2x384xf32>
    %cst_24 = arith.constant 1.000000e+00 : f32
    %104 = vector.broadcast %cst_24 : f32 to vector<2x384xf32>
    %105 = arith.addf %104, %103 : vector<2x384xf32>
    %106 = arith.divf %104, %105 : vector<2x384xf32>
    %107 = vector.extract_strided_slice %106 {offsets = [0, 0], sizes = [2, 128], strides = [1, 1]} : vector<2x384xf32> to vector<2x128xf32>
    %108 = vector.extract_strided_slice %106 {offsets = [0, 128], sizes = [2, 128], strides = [1, 1]} : vector<2x384xf32> to vector<2x128xf32>
    %109 = vector.extract_strided_slice %106 {offsets = [0, 256], sizes = [2, 128], strides = [1, 1]} : vector<2x384xf32> to vector<2x128xf32>
    %110 = vector.extract_strided_slice %100 {offsets = [0, 384], sizes = [2, 128], strides = [1, 1]} : vector<2x512xf32> to vector<2x128xf32>
    %111 = math.tanh %110 : vector<2x128xf32>
    %112 = arith.mulf %108, %97 : vector<2x128xf32>
    %113 = arith.mulf %107, %111 : vector<2x128xf32>
    %114 = arith.addf %112, %113 : vector<2x128xf32>
    %115 = math.tanh %114 : vector<2x128xf32>
    %116 = arith.mulf %109, %115 : vector<2x128xf32>
    %117 = arith.truncf %116 : vector<2x128xf32> to vector<2x128xbf16>
    %cst_25 = arith.constant dense<0.000000e+00> : vector<2x512xf32>
    %118 = tpu.matmul %117, %95, %cst_25 {dimension_numbers = #tpu.dot_dimension_numbers<[1], [0], [0], [1], [0, 0, 1, 1], [], []>} : vector<2x128xbf16>, vector<128x512xbf16>, vector<2x512xf32> -> vector<2x512xf32>
    %119 = arith.addf %64, %118 : vector<2x512xf32>
    %120 = vector.extract_strided_slice %119 {offsets = [0, 0], sizes = [2, 384], strides = [1, 1]} : vector<2x512xf32> to vector<2x384xf32>
    %121 = arith.negf %120 : vector<2x384xf32>
    %122 = math.exp %121 : vector<2x384xf32>
    %cst_26 = arith.constant 1.000000e+00 : f32
    %123 = vector.broadcast %cst_26 : f32 to vector<2x384xf32>
    %124 = arith.addf %123, %122 : vector<2x384xf32>
    %125 = arith.divf %123, %124 : vector<2x384xf32>
    %126 = vector.extract_strided_slice %125 {offsets = [0, 0], sizes = [2, 128], strides = [1, 1]} : vector<2x384xf32> to vector<2x128xf32>
    %127 = vector.extract_strided_slice %125 {offsets = [0, 128], sizes = [2, 128], strides = [1, 1]} : vector<2x384xf32> to vector<2x128xf32>
    %128 = vector.extract_strided_slice %125 {offsets = [0, 256], sizes = [2, 128], strides = [1, 1]} : vector<2x384xf32> to vector<2x128xf32>
    %129 = vector.extract_strided_slice %119 {offsets = [0, 384], sizes = [2, 128], strides = [1, 1]} : vector<2x512xf32> to vector<2x128xf32>
    %130 = math.tanh %129 : vector<2x128xf32>
    %131 = arith.mulf %127, %114 : vector<2x128xf32>
    %132 = arith.mulf %126, %130 : vector<2x128xf32>
    %133 = arith.addf %131, %132 : vector<2x128xf32>
    %134 = math.tanh %133 : vector<2x128xf32>
    %135 = arith.mulf %128, %134 : vector<2x128xf32>
    %136 = arith.truncf %135 : vector<2x128xf32> to vector<2x128xbf16>
    %cst_27 = arith.constant dense<0.000000e+00> : vector<2x512xf32>
    %137 = tpu.matmul %136, %95, %cst_27 {dimension_numbers = #tpu.dot_dimension_numbers<[1], [0], [0], [1], [0, 0, 1, 1], [], []>} : vector<2x128xbf16>, vector<128x512xbf16>, vector<2x512xf32> -> vector<2x512xf32>
    %138 = arith.addf %69, %137 : vector<2x512xf32>
    %139 = vector.extract_strided_slice %138 {offsets = [0, 0], sizes = [2, 384], strides = [1, 1]} : vector<2x512xf32> to vector<2x384xf32>
    %140 = arith.negf %139 : vector<2x384xf32>
    %141 = math.exp %140 : vector<2x384xf32>
    %cst_28 = arith.constant 1.000000e+00 : f32
    %142 = vector.broadcast %cst_28 : f32 to vector<2x384xf32>
    %143 = arith.addf %142, %141 : vector<2x384xf32>
    %144 = arith.divf %142, %143 : vector<2x384xf32>
    %145 = vector.extract_strided_slice %144 {offsets = [0, 0], sizes = [2, 128], strides = [1, 1]} : vector<2x384xf32> to vector<2x128xf32>
    %146 = vector.extract_strided_slice %144 {offsets = [0, 128], sizes = [2, 128], strides = [1, 1]} : vector<2x384xf32> to vector<2x128xf32>
    %147 = vector.extract_strided_slice %144 {offsets = [0, 256], sizes = [2, 128], strides = [1, 1]} : vector<2x384xf32> to vector<2x128xf32>
    %148 = vector.extract_strided_slice %138 {offsets = [0, 384], sizes = [2, 128], strides = [1, 1]} : vector<2x512xf32> to vector<2x128xf32>
    %149 = math.tanh %148 : vector<2x128xf32>
    %150 = arith.mulf %146, %133 : vector<2x128xf32>
    %151 = arith.mulf %145, %149 : vector<2x128xf32>
    %152 = arith.addf %150, %151 : vector<2x128xf32>
    %153 = math.tanh %152 : vector<2x128xf32>
    %154 = arith.mulf %147, %153 : vector<2x128xf32>
    %155 = arith.truncf %154 : vector<2x128xf32> to vector<2x128xbf16>
    %cst_29 = arith.constant dense<0.000000e+00> : vector<2x512xf32>
    %156 = tpu.matmul %155, %95, %cst_29 {dimension_numbers = #tpu.dot_dimension_numbers<[1], [0], [0], [1], [0, 0, 1, 1], [], []>} : vector<2x128xbf16>, vector<128x512xbf16>, vector<2x512xf32> -> vector<2x512xf32>
    %157 = arith.addf %74, %156 : vector<2x512xf32>
    %158 = vector.extract_strided_slice %157 {offsets = [0, 0], sizes = [2, 384], strides = [1, 1]} : vector<2x512xf32> to vector<2x384xf32>
    %159 = arith.negf %158 : vector<2x384xf32>
    %160 = math.exp %159 : vector<2x384xf32>
    %cst_30 = arith.constant 1.000000e+00 : f32
    %161 = vector.broadcast %cst_30 : f32 to vector<2x384xf32>
    %162 = arith.addf %161, %160 : vector<2x384xf32>
    %163 = arith.divf %161, %162 : vector<2x384xf32>
    %164 = vector.extract_strided_slice %163 {offsets = [0, 0], sizes = [2, 128], strides = [1, 1]} : vector<2x384xf32> to vector<2x128xf32>
    %165 = vector.extract_strided_slice %163 {offsets = [0, 128], sizes = [2, 128], strides = [1, 1]} : vector<2x384xf32> to vector<2x128xf32>
    %166 = vector.extract_strided_slice %163 {offsets = [0, 256], sizes = [2, 128], strides = [1, 1]} : vector<2x384xf32> to vector<2x128xf32>
    %167 = vector.extract_strided_slice %157 {offsets = [0, 384], sizes = [2, 128], strides = [1, 1]} : vector<2x512xf32> to vector<2x128xf32>
    %168 = math.tanh %167 : vector<2x128xf32>
    %169 = arith.mulf %165, %152 : vector<2x128xf32>
    %170 = arith.mulf %164, %168 : vector<2x128xf32>
    %171 = arith.addf %169, %170 : vector<2x128xf32>
    %172 = math.tanh %171 : vector<2x128xf32>
    %173 = arith.mulf %166, %172 : vector<2x128xf32>
    %174 = arith.truncf %173 : vector<2x128xf32> to vector<2x128xbf16>
    %cst_31 = arith.constant dense<0.000000e+00> : vector<2x512xf32>
    %175 = tpu.matmul %174, %95, %cst_31 {dimension_numbers = #tpu.dot_dimension_numbers<[1], [0], [0], [1], [0, 0, 1, 1], [], []>} : vector<2x128xbf16>, vector<128x512xbf16>, vector<2x512xf32> -> vector<2x512xf32>
    %176 = arith.addf %79, %175 : vector<2x512xf32>
    %177 = vector.extract_strided_slice %176 {offsets = [0, 0], sizes = [2, 384], strides = [1, 1]} : vector<2x512xf32> to vector<2x384xf32>
    %178 = arith.negf %177 : vector<2x384xf32>
    %179 = math.exp %178 : vector<2x384xf32>
    %cst_32 = arith.constant 1.000000e+00 : f32
    %180 = vector.broadcast %cst_32 : f32 to vector<2x384xf32>
    %181 = arith.addf %180, %179 : vector<2x384xf32>
    %182 = arith.divf %180, %181 : vector<2x384xf32>
    %183 = vector.extract_strided_slice %182 {offsets = [0, 0], sizes = [2, 128], strides = [1, 1]} : vector<2x384xf32> to vector<2x128xf32>
    %184 = vector.extract_strided_slice %182 {offsets = [0, 128], sizes = [2, 128], strides = [1, 1]} : vector<2x384xf32> to vector<2x128xf32>
    %185 = vector.extract_strided_slice %182 {offsets = [0, 256], sizes = [2, 128], strides = [1, 1]} : vector<2x384xf32> to vector<2x128xf32>
    %186 = vector.extract_strided_slice %176 {offsets = [0, 384], sizes = [2, 128], strides = [1, 1]} : vector<2x512xf32> to vector<2x128xf32>
    %187 = math.tanh %186 : vector<2x128xf32>
    %188 = arith.mulf %184, %171 : vector<2x128xf32>
    %189 = arith.mulf %183, %187 : vector<2x128xf32>
    %190 = arith.addf %188, %189 : vector<2x128xf32>
    %191 = math.tanh %190 : vector<2x128xf32>
    %192 = arith.mulf %185, %191 : vector<2x128xf32>
    %193 = arith.truncf %192 : vector<2x128xf32> to vector<2x128xbf16>
    %cst_33 = arith.constant dense<0.000000e+00> : vector<2x512xf32>
    %194 = tpu.matmul %193, %95, %cst_33 {dimension_numbers = #tpu.dot_dimension_numbers<[1], [0], [0], [1], [0, 0, 1, 1], [], []>} : vector<2x128xbf16>, vector<128x512xbf16>, vector<2x512xf32> -> vector<2x512xf32>
    %195 = arith.addf %84, %194 : vector<2x512xf32>
    %196 = vector.extract_strided_slice %195 {offsets = [0, 0], sizes = [2, 384], strides = [1, 1]} : vector<2x512xf32> to vector<2x384xf32>
    %197 = arith.negf %196 : vector<2x384xf32>
    %198 = math.exp %197 : vector<2x384xf32>
    %cst_34 = arith.constant 1.000000e+00 : f32
    %199 = vector.broadcast %cst_34 : f32 to vector<2x384xf32>
    %200 = arith.addf %199, %198 : vector<2x384xf32>
    %201 = arith.divf %199, %200 : vector<2x384xf32>
    %202 = vector.extract_strided_slice %201 {offsets = [0, 0], sizes = [2, 128], strides = [1, 1]} : vector<2x384xf32> to vector<2x128xf32>
    %203 = vector.extract_strided_slice %201 {offsets = [0, 128], sizes = [2, 128], strides = [1, 1]} : vector<2x384xf32> to vector<2x128xf32>
    %204 = vector.extract_strided_slice %201 {offsets = [0, 256], sizes = [2, 128], strides = [1, 1]} : vector<2x384xf32> to vector<2x128xf32>
    %205 = vector.extract_strided_slice %195 {offsets = [0, 384], sizes = [2, 128], strides = [1, 1]} : vector<2x512xf32> to vector<2x128xf32>
    %206 = math.tanh %205 : vector<2x128xf32>
    %207 = arith.mulf %203, %190 : vector<2x128xf32>
    %208 = arith.mulf %202, %206 : vector<2x128xf32>
    %209 = arith.addf %207, %208 : vector<2x128xf32>
    %210 = math.tanh %209 : vector<2x128xf32>
    %211 = arith.mulf %204, %210 : vector<2x128xf32>
    %212 = arith.truncf %211 : vector<2x128xf32> to vector<2x128xbf16>
    %cst_35 = arith.constant dense<0.000000e+00> : vector<2x512xf32>
    %213 = tpu.matmul %212, %95, %cst_35 {dimension_numbers = #tpu.dot_dimension_numbers<[1], [0], [0], [1], [0, 0, 1, 1], [], []>} : vector<2x128xbf16>, vector<128x512xbf16>, vector<2x512xf32> -> vector<2x512xf32>
    %214 = arith.addf %89, %213 : vector<2x512xf32>
    %215 = vector.extract_strided_slice %214 {offsets = [0, 0], sizes = [2, 384], strides = [1, 1]} : vector<2x512xf32> to vector<2x384xf32>
    %216 = arith.negf %215 : vector<2x384xf32>
    %217 = math.exp %216 : vector<2x384xf32>
    %cst_36 = arith.constant 1.000000e+00 : f32
    %218 = vector.broadcast %cst_36 : f32 to vector<2x384xf32>
    %219 = arith.addf %218, %217 : vector<2x384xf32>
    %220 = arith.divf %218, %219 : vector<2x384xf32>
    %221 = vector.extract_strided_slice %220 {offsets = [0, 0], sizes = [2, 128], strides = [1, 1]} : vector<2x384xf32> to vector<2x128xf32>
    %222 = vector.extract_strided_slice %220 {offsets = [0, 128], sizes = [2, 128], strides = [1, 1]} : vector<2x384xf32> to vector<2x128xf32>
    %223 = vector.extract_strided_slice %220 {offsets = [0, 256], sizes = [2, 128], strides = [1, 1]} : vector<2x384xf32> to vector<2x128xf32>
    %224 = vector.extract_strided_slice %214 {offsets = [0, 384], sizes = [2, 128], strides = [1, 1]} : vector<2x512xf32> to vector<2x128xf32>
    %225 = math.tanh %224 : vector<2x128xf32>
    %226 = arith.mulf %222, %209 : vector<2x128xf32>
    %227 = arith.mulf %221, %225 : vector<2x128xf32>
    %228 = arith.addf %226, %227 : vector<2x128xf32>
    %229 = math.tanh %228 : vector<2x128xf32>
    %230 = arith.mulf %223, %229 : vector<2x128xf32>
    %231 = arith.truncf %230 : vector<2x128xf32> to vector<2x128xbf16>
    %cst_37 = arith.constant dense<0.000000e+00> : vector<2x512xf32>
    %232 = tpu.matmul %231, %95, %cst_37 {dimension_numbers = #tpu.dot_dimension_numbers<[1], [0], [0], [1], [0, 0, 1, 1], [], []>} : vector<2x128xbf16>, vector<128x512xbf16>, vector<2x512xf32> -> vector<2x512xf32>
    %233 = arith.addf %94, %232 : vector<2x512xf32>
    %234 = vector.extract_strided_slice %233 {offsets = [0, 0], sizes = [2, 384], strides = [1, 1]} : vector<2x512xf32> to vector<2x384xf32>
    %235 = arith.negf %234 : vector<2x384xf32>
    %236 = math.exp %235 : vector<2x384xf32>
    %cst_38 = arith.constant 1.000000e+00 : f32
    %237 = vector.broadcast %cst_38 : f32 to vector<2x384xf32>
    %238 = arith.addf %237, %236 : vector<2x384xf32>
    %239 = arith.divf %237, %238 : vector<2x384xf32>
    %240 = vector.extract_strided_slice %239 {offsets = [0, 0], sizes = [2, 128], strides = [1, 1]} : vector<2x384xf32> to vector<2x128xf32>
    %241 = vector.extract_strided_slice %239 {offsets = [0, 128], sizes = [2, 128], strides = [1, 1]} : vector<2x384xf32> to vector<2x128xf32>
    %242 = vector.extract_strided_slice %239 {offsets = [0, 256], sizes = [2, 128], strides = [1, 1]} : vector<2x384xf32> to vector<2x128xf32>
    %243 = vector.extract_strided_slice %233 {offsets = [0, 384], sizes = [2, 128], strides = [1, 1]} : vector<2x512xf32> to vector<2x128xf32>
    %244 = math.tanh %243 : vector<2x128xf32>
    %245 = arith.mulf %241, %228 : vector<2x128xf32>
    %246 = arith.mulf %240, %244 : vector<2x128xf32>
    %247 = arith.addf %245, %246 : vector<2x128xf32>
    %248 = math.tanh %247 : vector<2x128xf32>
    %249 = arith.mulf %242, %248 : vector<2x128xf32>
    %250 = tpu.concatenate %116, %135, %154, %173, %192, %211, %230, %249 in 0 : vector<2x128xf32>, vector<2x128xf32>, vector<2x128xf32>, vector<2x128xf32>, vector<2x128xf32>, vector<2x128xf32>, vector<2x128xf32>, vector<2x128xf32> -> vector<16x128xf32>
    %251 = tpu.concatenate %249, %230, %211, %192, %173, %154, %135, %116 in 0 : vector<2x128xf32>, vector<2x128xf32>, vector<2x128xf32>, vector<2x128xf32>, vector<2x128xf32>, vector<2x128xf32>, vector<2x128xf32>, vector<2x128xf32> -> vector<16x128xf32>
    %c0_39 = arith.constant 0 : index
    %c0_40 = arith.constant 0 : index
    %252 = vector.load %arg7[%c0_39, %c0_40] : memref<128x3xf32, #tpu.memory_space<vmem>>, vector<128x3xf32>
    %cst_41 = arith.constant dense<0.000000e+00> : vector<16x3xf32>
    %253 = tpu.matmul %250, %252, %cst_41 {dimension_numbers = #tpu.dot_dimension_numbers<[1], [0], [0], [1], [0, 0, 1, 1], [], []>} : vector<16x128xf32>, vector<128x3xf32>, vector<16x3xf32> -> vector<16x3xf32>
    %c0_42 = arith.constant 0 : index
    %c0_43 = arith.constant 0 : index
    %254 = vector.load %arg8[%c0_42, %c0_43] : memref<128x3xf32, #tpu.memory_space<vmem>>, vector<128x3xf32>
    %cst_44 = arith.constant dense<0.000000e+00> : vector<16x3xf32>
    %255 = tpu.matmul %251, %254, %cst_44 {dimension_numbers = #tpu.dot_dimension_numbers<[1], [0], [0], [1], [0, 0, 1, 1], [], []>} : vector<16x128xf32>, vector<128x3xf32>, vector<16x3xf32> -> vector<16x3xf32>
    %256 = arith.addf %253, %255 : vector<16x3xf32>
    %c0_45 = arith.constant 0 : index
    %c0_46 = arith.constant 0 : index
    %257 = vector.load %arg9[%c0_45, %c0_46] : memref<1x3xf32, #tpu.memory_space<vmem>>, vector<1x3xf32>
    %258 = vector.broadcast %257 : vector<1x3xf32> to vector<16x3xf32>
    %259 = arith.addf %256, %258 : vector<16x3xf32>
    %cst_47 = arith.constant dense<0xFF800000> : vector<16xf32>
    %260 = vector.multi_reduction <maximumf>, %259, %cst_47 [1] : vector<16x3xf32> to vector<16xf32>
    %261 = vector.shape_cast %260 : vector<16xf32> to vector<16x1xf32>
    %262 = vector.broadcast %261 : vector<16x1xf32> to vector<16x3xf32>
    %263 = arith.subf %259, %262 : vector<16x3xf32>
    %264 = math.exp %263 : vector<16x3xf32>
    %265 = vector.broadcast %261 : vector<16x1xf32> to vector<16x3xf32>
    %266 = arith.subf %259, %265 : vector<16x3xf32>
    %cst_48 = arith.constant dense<0.000000e+00> : vector<16xf32>
    %267 = vector.multi_reduction <add>, %264, %cst_48 [1] : vector<16x3xf32> to vector<16xf32>
    %268 = vector.shape_cast %267 : vector<16xf32> to vector<16x1xf32>
    %269 = math.log %268 : vector<16x1xf32>
    %270 = vector.broadcast %269 : vector<16x1xf32> to vector<16x3xf32>
    %271 = arith.subf %266, %270 : vector<16x3xf32>
    %c0_49 = arith.constant 0 : index
    %c0_50 = arith.constant 0 : index
    %272 = vector.load %arg11[%c0_49, %c0_50] : memref<16x3xf32, #tpu.memory_space<vmem>>, vector<16x3xf32>
    tpu.vector_store %arg11[%c0_49, %c0_50], %271 {strides = array<i32>} : memref<16x3xf32, #tpu.memory_space<vmem>>, vector<16x3xf32>,
    return
  }
}

</mosaic_0001>

<llo_original>
// kernel: model_forward.1
$region0: #{model_forward.1}
  #allocation0 [shape = 'u32[]', space=smem, size = 0x4, offset = 0x4, fixed_abs, tag = 'smem constant byte address 0x4 - core index']
  #allocation1 [shape = 'u32[144,128]{1,0:T(1,128)}', space=vmem, size = 0x12000, scoped, tag = 'internal scratch']
  %s0 = inlined_call_operand.vmem [shape: s32[16,1], index: 0, kind: input, shape index: {}]
  %s1 = inlined_call_operand.vmem [shape: f32[50,32], index: 1, kind: input, shape index: {}]
  %s2 = inlined_call_operand.vmem [shape: f32[32,512], index: 2, kind: input, shape index: {}]
  %s3 = inlined_call_operand.vmem [shape: f32[1,512], index: 3, kind: input, shape index: {}]
  %s4 = inlined_call_operand.vmem [shape: bf16[128,512], index: 4, kind: input, shape index: {}]
  %s5 = inlined_call_operand.vmem [shape: f32[32,4], index: 5, kind: input, shape index: {}]
  %s6 = inlined_call_operand.vmem [shape: f32[1,4], index: 6, kind: input, shape index: {}]
  %s7 = inlined_call_operand.vmem [shape: f32[128,3], index: 7, kind: input, shape index: {}]
  %s8 = inlined_call_operand.vmem [shape: f32[128,3], index: 8, kind: input, shape index: {}]
  %s9 = inlined_call_operand.vmem [shape: f32[1,3], index: 9, kind: input, shape index: {}]
  %s10 = inlined_call_operand.hbm [shape: f32[2,4], index: 10, kind: output, shape index: {0}]
  %s11 = inlined_call_operand.vmem [shape: f32[16,3], index: 11, kind: output, shape index: {1}]
  %12 = xla_tuple %s10, %s11
  %s13 = sld [smem:[#allocation0]]
  $region58: #{model_forward.1} parent=0
    _
  %s15 = ssub.s32 1, %s13
  %s16 = scalar_select 0, %s15, %s13
  $region1: #{model_forward.1} parent=0
    #allocation2 [shape = 'u8[1024]{0}', space=vmem, size = 0x400, scoped, tag = 'output window, operand 0, single buffered']
    #allocation3 [shape = 's32[1]{0}', space=sflag, size = 0x4, scoped, tag = 'scoped memory for model_forward.1']
    %17 = vsyncpa [#allocation3], 0
    // Predicated region
    $region2: #{model_forward.1} parent=1 // pred_check
      _
    $region3: #{model_forward.1} parent=1 // pred_check_branch
      %19 = sbr.rel (0) target = $region5
    $region4: #{model_forward.1} parent=1 // pred_region
      _
    $region5: #{model_forward.1} parent=1 // pred_fallthru
      _
    // Predicated region
    $region6: #{model_forward.1} parent=1 // pred_check
      _
    $region7: #{model_forward.1} parent=1 // pred_check_branch
      %21 = sbr.rel (0) target = $region9
    $region8: #{model_forward.1} parent=1 // pred_region
      _
    $region9: #{model_forward.1} parent=1 // pred_fallthru
      _
    // Predicated region
    $region10: #{model_forward.1} parent=1 // pred_check
      _
    $region11: #{model_forward.1} parent=1 // pred_check_branch
      %23 = sbr.rel (0) target = $region13
    $region12: #{model_forward.1} parent=1 // pred_region
      _
    $region13: #{model_forward.1} parent=1 // pred_fallthru
      _
    // Predicated region
    $region14: #{model_forward.1} parent=1 // pred_check
      _
    $region15: #{model_forward.1} parent=1 // pred_check_branch
      %25 = sbr.rel (0) target = $region17
    $region16: #{model_forward.1} parent=1 // pred_region
      _
    $region17: #{model_forward.1} parent=1 // pred_fallthru
      _
    // Predicated region
    $region18: #{model_forward.1} parent=1 // pred_check
      _
    $region19: #{model_forward.1} parent=1 // pred_check_branch
      %27 = sbr.rel (0) target = $region21
    $region20: #{model_forward.1} parent=1 // pred_region
      _
    $region21: #{model_forward.1} parent=1 // pred_fallthru
      _
    // Predicated region
    $region22: #{model_forward.1} parent=1 // pred_check
      _
    $region23: #{model_forward.1} parent=1 // pred_check_branch
      %29 = sbr.rel (0) target = $region25
    $region24: #{model_forward.1} parent=1 // pred_region
      _
    $region25: #{model_forward.1} parent=1 // pred_fallthru
      _
    // Predicated region
    $region26: #{model_forward.1} parent=1 // pred_check
      _
    $region27: #{model_forward.1} parent=1 // pred_check_branch
      %31 = sbr.rel (0) target = $region29
    $region28: #{model_forward.1} parent=1 // pred_region
      _
    $region29: #{model_forward.1} parent=1 // pred_fallthru
      _
    // Predicated region
    $region30: #{model_forward.1} parent=1 // pred_check
      _
    $region31: #{model_forward.1} parent=1 // pred_check_branch
      %33 = sbr.rel (0) target = $region33
    $region32: #{model_forward.1} parent=1 // pred_region
      _
    $region33: #{model_forward.1} parent=1 // pred_fallthru
      _
    // Predicated region
    $region34: #{model_forward.1} parent=1 // pred_check
      _
    $region35: #{model_forward.1} parent=1 // pred_check_branch
      %35 = sbr.rel (0) target = $region37
    $region36: #{model_forward.1} parent=1 // pred_region
      _
    $region37: #{model_forward.1} parent=1 // pred_fallthru
      _
    // Predicated region
    $region38: #{model_forward.1} parent=1 // pred_check
      _
    $region39: #{model_forward.1} parent=1 // pred_check_branch
      %37 = sbr.rel (0) target = $region41
    $region40: #{model_forward.1} parent=1 // pred_region
      _
    $region41: #{model_forward.1} parent=1 // pred_fallthru
      _
    %v39 = vld [vmem:[%s0] sm:$0xff]
    %v40 = vld [vmem:[%s0 + $0x8] sm:$0xff]
    %v41 = vlaneseq
    %v42 = vand.u32 %v41, 127
    %43 = vset.pattern.permute.xlu0 0
    %44 = vperm.xlu0 %43, %v39
    %v45 = vpop.permute.xlu0 %44
    %46 = vset.pattern.permute.xlu0 0
    %47 = vperm.xlu0 %46, %v40
    %v48 = vpop.permute.xlu0 %47
    %vm49 = vcmp.eq.s32.totalorder %v42, %v45
    %vm50 = vcmp.eq.s32.totalorder %v42, %v48
    %v51 = vsel %vm49, 1, 0
    %v52 = vsel %vm50, 1, 0
    %v53 = vcvt.s32.f32 %v51
    %v54 = vcvt.s32.f32 %v52
    %v55 = vld [vmem:[%s1] sm:$0xff]
    %v56 = vld [vmem:[%s1 + $0x8] sm:$0xff]
    %v57 = vld [vmem:[%s1 + $0x10] sm:$0xff]
    %v58 = vld [vmem:[%s1 + $0x18] sm:$0xff]
    %v59 = vld [vmem:[%s1 + $0x20] sm:$0xff]
    %v60 = vld [vmem:[%s1 + $0x28] sm:$0xff]
    %v61 = vld [vmem:[%s1 + $0x30] sm:$0x3]
    %vm62 = vcmask 408576
    %v64 = vsel %vm62, %v53, 0
    %v67 = vsel %vm62, %v54, 0
    %vm69 = vcmask 1041408
    %v71 = vsel %vm69, %v61, 0
    %73 = vmatprep.subr.mxu0 0.0
    %74 = vmatpush1.msra.mxu0 %v55
    %75 = vmatprep.subr.mxu0 0.0
    %76 = vmatpush1.msra.mxu0 %v56
    %77 = vmatprep.subr.mxu0 0.0
    %78 = vmatpush1.msra.mxu0 %v57
    %79 = vmatprep.subr.mxu0 0.0
    %80 = vmatpush1.msra.mxu0 %v58
    %81 = vmatprep.subr.mxu0 0.0
    %82 = vmatpush1.msra.mxu0 %v59
    %83 = vmatprep.subr.mxu0 0.0
    %84 = vmatpush1.msra.mxu0 %v60
    %85 = vmatprep.subr.mxu0 0.0
    %86 = vmatpush1.msra.mxu0 %v71
    %87 = vmatprep.subr.mxu0 0.0
    %88 = vmatpush1.msra.mxu0 0.0
    %89 = vmatprep.subr.mxu0 0.0
    %90 = vmatpush1.msra.mxu0 0.0
    %91 = vmatprep.subr.mxu0 0.0
    %92 = vmatpush1.msra.mxu0 0.0
    %93 = vmatprep.subr.mxu0 0.0
    %94 = vmatpush1.msra.mxu0 0.0
    %95 = vmatprep.subr.mxu0 0.0
    %96 = vmatpush1.msra.mxu0 0.0
    %97 = vmatprep.subr.mxu0 0.0
    %98 = vmatpush1.msra.mxu0 0.0
    %99 = vmatprep.subr.mxu0 0.0
    %100 = vmatpush1.msra.mxu0 0.0
    %101 = vmatprep.subr.mxu0 0.0
    %102 = vmatpush1.msra.mxu0 0.0
    %103 = vmatprep.subr.mxu0 0.0
    %104 = vmatpush1.msra.mxu0 0.0
    %105 = vmatprep.subr.mxu0 0.0
    %106 = vmatpush1.msra.mxu0 0.0
    %107 = vmatprep.subr.mxu0 0.0
    %108 = vmatpush1.msra.mxu0 0.0
    %109 = vmatprep.subr.mxu0 0.0
    %110 = vmatpush1.msra.mxu0 0.0
    %111 = vmatprep.subr.mxu0 0.0
    %112 = vmatpush1.msra.mxu0 0.0
    %113 = vmatprep.subr.mxu0 0.0
    %114 = vmatpush1.msra.mxu0 0.0
    %115 = vmatprep.subr.mxu0 0.0
    %116 = vmatpush1.msra.mxu0 0.0
    %117 = vmatprep.subr.mxu0 0.0
    %118 = vmatpush1.msra.mxu0 0.0
    %119 = vmatprep.subr.mxu0 0.0
    %120 = vmatpush1.msra.mxu0 0.0
    %121 = vmatprep.subr.mxu0 0.0
    %122 = vmatpush1.msra.mxu0 0.0
    %123 = vmatprep.subr.mxu0 0.0
    %124 = vmatpush1.msra.mxu0 0.0
    %125 = vmatprep.subr.mxu0 0.0
    %126 = vmatpush1.msra.mxu0 0.0
    %127 = vmatprep.subr.mxu0 0.0
    %128 = vmatpush1.msra.mxu0 0.0
    %129 = vmatprep.subr.mxu0 0.0
    %130 = vmatpush1.msra.mxu0 0.0
    %131 = vmatprep.subr.mxu0 0.0
    %132 = vmatpush1.msra.mxu0 0.0
    %133 = vmatprep.subr.mxu0 0.0
    %134 = vmatpush1.msra.mxu0 0.0
    %135 = vmatprep.subr.mxu0 0.0
    %136 = vmatpush1.msra.mxu0 0.0
    %137 = vmatprep.mubr.f32.mxu0 0.0
    %138 = vmatmul.mubr.f32.gmra.mrb[0].mxu0 %v64
    %v139 = vpop.f32.mrb[0].mxu0
    %v140 = vadd.f32 0.0, %v139
    %v141 = vpop.f32.mrb[0].mxu0
    %142 = vmatprep.mubr.f32.mxu0 0.0
    %143 = vmatmul.mubr.f32.gmra.mrb[0].mxu0 %v67
    %v144 = vpop.f32.mrb[0].mxu0
    %v145 = vadd.f32 0.0, %v144
    %v146 = vpop.f32.mrb[0].mxu0
    %147 = vdwg.mxu0
    %v149 = vrot.slane %v140, 2
    %v151 = vadd.f32 %v140, %v149
    %v152 = vrot.slane %v140, 4
    %v154 = vadd.f32 %v151, %v152
    %v155 = vrot.slane %v140, 6
    %v157 = vadd.f32 %v154, %v155
    %v158 = vadd.f32 %v157, %v145
    %v160 = vrot.slane %v145, 2
    %v162 = vadd.f32 %v158, %v160
    %v163 = vrot.slane %v145, 4
    %v165 = vadd.f32 %v162, %v163
    %v166 = vrot.slane %v145, 6
    %v168 = vadd.f32 %v165, %v166
    %v169 = vmul.f32 %v168, 0.125
    %v170 = vld [vmem:[%s5] sm:$0xff]
    %v171 = vld [vmem:[%s5 + $0x8] sm:$0xff]
    %v172 = vld [vmem:[%s5 + $0x10] sm:$0xff]
    %v173 = vld [vmem:[%s5 + $0x18] sm:$0xff]
    %v174 = vld [vmem:[%s6] sm:$0x1]
    %v176 = vlaneseq
    %v177 = vshrl.u32 %v176, 7
    %v178 = vsub.s32 0, %v177
    %v179 = vrot.slane %v174, %v178
    %vm181 = vcmask 261120
    %v183 = vsel %vm181, %v169, 0
    %185 = vmatprep.subr.mxu0 0.0
    %186 = vmatpush1.msra.mxu0 %v170
    %187 = vmatprep.subr.mxu0 0.0
    %188 = vmatpush1.msra.mxu0 %v171
    %189 = vmatprep.subr.mxu0 0.0
    %190 = vmatpush1.msra.mxu0 %v172
    %191 = vmatprep.subr.mxu0 0.0
    %192 = vmatpush1.msra.mxu0 %v173
    %193 = vmatprep.subr.mxu0 0.0
    %194 = vmatpush1.msra.mxu0 0.0
    %195 = vmatprep.subr.mxu0 0.0
    %196 = vmatpush1.msra.mxu0 0.0
    %197 = vmatprep.subr.mxu0 0.0
    %198 = vmatpush1.msra.mxu0 0.0
    %199 = vmatprep.subr.mxu0 0.0
    %200 = vmatpush1.msra.mxu0 0.0
    %201 = vmatprep.subr.mxu0 0.0
    %202 = vmatpush1.msra.mxu0 0.0
    %203 = vmatprep.subr.mxu0 0.0
    %204 = vmatpush1.msra.mxu0 0.0
    %205 = vmatprep.subr.mxu0 0.0
    %206 = vmatpush1.msra.mxu0 0.0
    %207 = vmatprep.subr.mxu0 0.0
    %208 = vmatpush1.msra.mxu0 0.0
    %209 = vmatprep.subr.mxu0 0.0
    %210 = vmatpush1.msra.mxu0 0.0
    %211 = vmatprep.subr.mxu0 0.0
    %212 = vmatpush1.msra.mxu0 0.0
    %213 = vmatprep.subr.mxu0 0.0
    %214 = vmatpush1.msra.mxu0 0.0
    %215 = vmatprep.subr.mxu0 0.0
    %216 = vmatpush1.msra.mxu0 0.0
    %217 = vmatprep.subr.mxu0 0.0
    %218 = vmatpush1.msra.mxu0 0.0
    %219 = vmatprep.subr.mxu0 0.0
    %220 = vmatpush1.msra.mxu0 0.0
    %221 = vmatprep.subr.mxu0 0.0
    %222 = vmatpush1.msra.mxu0 0.0
    %223 = vmatprep.subr.mxu0 0.0
    %224 = vmatpush1.msra.mxu0 0.0
    %225 = vmatprep.subr.mxu0 0.0
    %226 = vmatpush1.msra.mxu0 0.0
    %227 = vmatprep.subr.mxu0 0.0
    %228 = vmatpush1.msra.mxu0 0.0
    %229 = vmatprep.subr.mxu0 0.0
    %230 = vmatpush1.msra.mxu0 0.0
    %231 = vmatprep.subr.mxu0 0.0
    %232 = vmatpush1.msra.mxu0 0.0
    %233 = vmatprep.subr.mxu0 0.0
    %234 = vmatpush1.msra.mxu0 0.0
    %235 = vmatprep.subr.mxu0 0.0
    %236 = vmatpush1.msra.mxu0 0.0
    %237 = vmatprep.subr.mxu0 0.0
    %238 = vmatpush1.msra.mxu0 0.0
    %239 = vmatprep.subr.mxu0 0.0
    %240 = vmatpush1.msra.mxu0 0.0
    %241 = vmatprep.subr.mxu0 0.0
    %242 = vmatpush1.msra.mxu0 0.0
    %243 = vmatprep.subr.mxu0 0.0
    %244 = vmatpush1.msra.mxu0 0.0
    %245 = vmatprep.subr.mxu0 0.0
    %246 = vmatpush1.msra.mxu0 0.0
    %247 = vmatprep.subr.mxu0 0.0
    %248 = vmatpush1.msra.mxu0 0.0
    %249 = vmatprep.mubr.f32.mxu0 0.0
    %250 = vmatmul.mubr.f32.gmra.mrb[0].mxu0 %v183
    %v251 = vpop.f32.mrb[0].mxu0
    %v252 = vadd.f32 %v179, %v251
    %v253 = vpop.f32.mrb[0].mxu0
    %254 = vdwg.mxu0
    %vm255 = vcmask 25600
    %256 = vst.msk [vmem:[#allocation2] sm:$0x3] %vm255, %v252
    %v257 = vld [vmem:[%s2] sm:$0xff]
    %v258 = vld [vmem:[%s2 + $0x8] sm:$0xff]
    %v259 = vld [vmem:[%s2 + $0x10] sm:$0xff]
    %v260 = vld [vmem:[%s2 + $0x18] sm:$0xff]
    %v261 = vld [vmem:[%s2 + $0x20] sm:$0xff]
    %v262 = vld [vmem:[%s2 + $0x28] sm:$0xff]
    %v263 = vld [vmem:[%s2 + $0x30] sm:$0xff]
    %v264 = vld [vmem:[%s2 + $0x38] sm:$0xff]
    %v265 = vld [vmem:[%s2 + $0x40] sm:$0xff]
    %v266 = vld [vmem:[%s2 + $0x48] sm:$0xff]
    %v267 = vld [vmem:[%s2 + $0x50] sm:$0xff]
    %v268 = vld [vmem:[%s2 + $0x58] sm:$0xff]
    %v269 = vld [vmem:[%s2 + $0x60] sm:$0xff]
    %v270 = vld [vmem:[%s2 + $0x68] sm:$0xff]
    %v271 = vld [vmem:[%s2 + $0x70] sm:$0xff]
    %v272 = vld [vmem:[%s2 + $0x78] sm:$0xff]
    %v273 = vld [vmem:[%s3] sm:$0xf]
    %v275 = vlaneseq
    %v276 = vshrl.u32 %v275, 7
    %v277 = vsub.s32 0, %v276
    %v278 = vrot.slane %v273, %v277
    %v279 = vlaneseq
    %v280 = vshrl.u32 %v279, 7
    %v281 = vsub.s32 1, %v280
    %v282 = vrot.slane %v273, %v281
    %v283 = vlaneseq
    %v284 = vshrl.u32 %v283, 7
    %v285 = vsub.s32 2, %v284
    %v286 = vrot.slane %v273, %v285
    %v287 = vlaneseq
    %v288 = vshrl.u32 %v287, 7
    %v289 = vsub.s32 3, %v288
    %v290 = vrot.slane %v273, %v289
    %v295 = vsel %vm181, %v140, 0
    %v297 = vsel %vm181, %v145, 0
    %299 = vmatprep.subr.mxu0 %v258
    %300 = vmatpush1.msra.mxu0 %v257
    %301 = vmatprep.subr.mxu0 %v262
    %302 = vmatpush1.msra.mxu0 %v261
    %303 = vmatprep.subr.mxu0 %v266
    %304 = vmatpush1.msra.mxu0 %v265
    %305 = vmatprep.subr.mxu0 %v270
    %306 = vmatpush1.msra.mxu0 %v269
    %307 = vmatprep.subr.mxu0 0.0
    %308 = vmatpush1.msra.mxu0 0.0
    %309 = vmatprep.subr.mxu0 0.0
    %310 = vmatpush1.msra.mxu0 0.0
    %311 = vmatprep.subr.mxu0 0.0
    %312 = vmatpush1.msra.mxu0 0.0
    %313 = vmatprep.subr.mxu0 0.0
    %314 = vmatpush1.msra.mxu0 0.0
    %315 = vmatprep.subr.mxu0 0.0
    %316 = vmatpush1.msra.mxu0 0.0
    %317 = vmatprep.subr.mxu0 0.0
    %318 = vmatpush1.msra.mxu0 0.0
    %319 = vmatprep.subr.mxu0 0.0
    %320 = vmatpush1.msra.mxu0 0.0
    %321 = vmatprep.subr.mxu0 0.0
    %322 = vmatpush1.msra.mxu0 0.0
    %323 = vmatprep.subr.mxu0 0.0
    %324 = vmatpush1.msra.mxu0 0.0
    %325 = vmatprep.subr.mxu0 0.0
    %326 = vmatpush1.msra.mxu0 0.0
    %327 = vmatprep.subr.mxu0 0.0
    %328 = vmatpush1.msra.mxu0 0.0
    %329 = vmatprep.subr.mxu0 0.0
    %330 = vmatpush1.msra.mxu0 0.0
    %331 = vmatprep.subr.mxu0 0.0
    %332 = vmatpush1.msra.mxu0 0.0
    %333 = vmatprep.subr.mxu0 0.0
    %334 = vmatpush1.msra.mxu0 0.0
    %335 = vmatprep.subr.mxu0 0.0
    %336 = vmatpush1.msra.mxu0 0.0
    %337 = vmatprep.subr.mxu0 0.0
    %338 = vmatpush1.msra.mxu0 0.0
    %339 = vmatprep.subr.mxu0 0.0
    %340 = vmatpush1.msra.mxu0 0.0
    %341 = vmatprep.subr.mxu0 0.0
    %342 = vmatpush1.msra.mxu0 0.0
    %343 = vmatprep.subr.mxu0 0.0
    %344 = vmatpush1.msra.mxu0 0.0
    %345 = vmatprep.subr.mxu0 0.0
    %346 = vmatpush1.msra.mxu0 0.0
    %347 = vmatprep.subr.mxu0 0.0
    %348 = vmatpush1.msra.mxu0 0.0
    %349 = vmatprep.subr.mxu0 0.0
    %350 = vmatpush1.msra.mxu0 0.0
    %351 = vmatprep.subr.mxu0 0.0
    %352 = vmatpush1.msra.mxu0 0.0
    %353 = vmatprep.subr.mxu0 0.0
    %354 = vmatpush1.msra.mxu0 0.0
    %355 = vmatprep.subr.mxu0 0.0
    %356 = vmatpush1.msra.mxu0 0.0
    %357 = vmatprep.subr.mxu0 0.0
    %358 = vmatpush1.msra.mxu0 0.0
    %359 = vmatprep.subr.mxu0 0.0
    %360 = vmatpush1.msra.mxu0 0.0
    %361 = vmatprep.subr.mxu0 0.0
    %362 = vmatpush1.msra.mxu0 0.0
    %363 = vmatprep.mubr.f32.mxu0 0.0
    %364 = vmatmul.mubr.f32.gmra.mrb[0].mxu0 %v295
    %v365 = vpop.f32.mrb[0].mxu0
    %v366 = vadd.f32 %v278, %v365
    %v367 = vpop.f32.mrb[0].mxu0
    %v368 = vadd.f32 %v282, %v367
    %369 = vmatprep.mubr.f32.mxu0 0.0
    %370 = vmatmul.mubr.f32.gmra.mrb[0].mxu0 %v297
    %v371 = vpop.f32.mrb[0].mxu0
    %v372 = vadd.f32 %v278, %v371
    %v373 = vpop.f32.mrb[0].mxu0
    %v374 = vadd.f32 %v282, %v373
    %375 = vdwg.mxu0
    %376 = vmatprep.subr.mxu0 %v260
    %377 = vmatpush1.msra.mxu0 %v259
    %378 = vmatprep.subr.mxu0 %v264
    %379 = vmatpush1.msra.mxu0 %v263
    %380 = vmatprep.subr.mxu0 %v268
    %381 = vmatpush1.msra.mxu0 %v267
    %382 = vmatprep.subr.mxu0 %v272
    %383 = vmatpush1.msra.mxu0 %v271
    %384 = vmatprep.subr.mxu0 0.0
    %385 = vmatpush1.msra.mxu0 0.0
    %386 = vmatprep.subr.mxu0 0.0
    %387 = vmatpush1.msra.mxu0 0.0
    %388 = vmatprep.subr.mxu0 0.0
    %389 = vmatpush1.msra.mxu0 0.0
    %390 = vmatprep.subr.mxu0 0.0
    %391 = vmatpush1.msra.mxu0 0.0
    %392 = vmatprep.subr.mxu0 0.0
    %393 = vmatpush1.msra.mxu0 0.0
    %394 = vmatprep.subr.mxu0 0.0
    %395 = vmatpush1.msra.mxu0 0.0
    %396 = vmatprep.subr.mxu0 0.0
    %397 = vmatpush1.msra.mxu0 0.0
    %398 = vmatprep.subr.mxu0 0.0
    %399 = vmatpush1.msra.mxu0 0.0
    %400 = vmatprep.subr.mxu0 0.0
    %401 = vmatpush1.msra.mxu0 0.0
    %402 = vmatprep.subr.mxu0 0.0
    %403 = vmatpush1.msra.mxu0 0.0
    %404 = vmatprep.subr.mxu0 0.0
    %405 = vmatpush1.msra.mxu0 0.0
    %406 = vmatprep.subr.mxu0 0.0
    %407 = vmatpush1.msra.mxu0 0.0
    %408 = vmatprep.subr.mxu0 0.0
    %409 = vmatpush1.msra.mxu0 0.0
    %410 = vmatprep.subr.mxu0 0.0
    %411 = vmatpush1.msra.mxu0 0.0
    %412 = vmatprep.subr.mxu0 0.0
    %413 = vmatpush1.msra.mxu0 0.0
    %414 = vmatprep.subr.mxu0 0.0
    %415 = vmatpush1.msra.mxu0 0.0
    %416 = vmatprep.subr.mxu0 0.0
    %417 = vmatpush1.msra.mxu0 0.0
    %418 = vmatprep.subr.mxu0 0.0
    %419 = vmatpush1.msra.mxu0 0.0
    %420 = vmatprep.subr.mxu0 0.0
    %421 = vmatpush1.msra.mxu0 0.0
    %422 = vmatprep.subr.mxu0 0.0
    %423 = vmatpush1.msra.mxu0 0.0
    %424 = vmatprep.subr.mxu0 0.0
    %425 = vmatpush1.msra.mxu0 0.0
    %426 = vmatprep.subr.mxu0 0.0
    %427 = vmatpush1.msra.mxu0 0.0
    %428 = vmatprep.subr.mxu0 0.0
    %429 = vmatpush1.msra.mxu0 0.0
    %430 = vmatprep.subr.mxu0 0.0
    %431 = vmatpush1.msra.mxu0 0.0
    %432 = vmatprep.subr.mxu0 0.0
    %433 = vmatpush1.msra.mxu0 0.0
    %434 = vmatprep.subr.mxu0 0.0
    %435 = vmatpush1.msra.mxu0 0.0
    %436 = vmatprep.subr.mxu0 0.0
    %437 = vmatpush1.msra.mxu0 0.0
    %438 = vmatprep.subr.mxu0 0.0
    %439 = vmatpush1.msra.mxu0 0.0
    %440 = vmatprep.mubr.f32.mxu0 0.0
    %441 = vmatmul.mubr.f32.gmra.mrb[0].mxu0 %v295
    %v442 = vpop.f32.mrb[0].mxu0
    %v443 = vadd.f32 %v286, %v442
    %v444 = vpop.f32.mrb[0].mxu0
    %v445 = vadd.f32 %v290, %v444
    %446 = vmatprep.mubr.f32.mxu0 0.0
    %447 = vmatmul.mubr.f32.gmra.mrb[0].mxu0 %v297
    %v448 = vpop.f32.mrb[0].mxu0
    %v449 = vadd.f32 %v286, %v448
    %v450 = vpop.f32.mrb[0].mxu0
    %v451 = vadd.f32 %v290, %v450
    %452 = vdwg.mxu0
    %v453 = vadd.s32 %v42, 128
    %v454 = vadd.s32 %v42, 256
    %v455 = vadd.s32 %v42, 384
    %vm456 = vcmp.lt.s32.totalorder %v42, 0
    %v457 = vsub.s32 0, %v42
    %v458 = vsel %vm456, %v457, %v42
    %v459 = vshrl.u32 %v458, 7
    %v460 = vand.u32 %v458, 127
    %v461 = vsub.s32 0, %v460
    %v462 = vsel %vm456, %v461, %v460
    %vm463 = vcmp.lt.s32.totalorder %v453, 0
    %v464 = vsub.s32 0, %v453
    %v465 = vsel %vm463, %v464, %v453
    %v466 = vshrl.u32 %v465, 7
    %v467 = vand.u32 %v465, 127
    %v468 = vsub.s32 0, %v467
    %v469 = vsel %vm463, %v468, %v467
    %vm470 = vcmp.lt.s32.totalorder %v454, 0
    %v471 = vsub.s32 0, %v454
    %v472 = vsel %vm470, %v471, %v454
    %v473 = vshrl.u32 %v472, 7
    %v474 = vand.u32 %v472, 127
    %v475 = vsub.s32 0, %v474
    %v476 = vsel %vm470, %v475, %v474
    %vm477 = vcmp.lt.s32.totalorder %v455, 0
    %v478 = vsub.s32 0, %v455
    %v479 = vsel %vm477, %v478, %v455
    %v480 = vshrl.u32 %v479, 7
    %v481 = vand.u32 %v479, 127
    %v482 = vsub.s32 0, %v481
    %v483 = vsel %vm477, %v482, %v481
    %vm484 = vcmp.ne.s32.totalorder %v462, 0
    %vm485 = vcmp.ne.s32.totalorder %v469, 0
    %vm486 = vcmp.ne.s32.totalorder %v476, 0
    %vm487 = vcmp.ne.s32.totalorder %v483, 0
    %vm488 = vcmp.lt.s32.totalorder %v462, 0
    %vm489 = vcmp.lt.s32.totalorder %v469, 0
    %vm490 = vcmp.lt.s32.totalorder %v476, 0
    %vm491 = vcmp.lt.s32.totalorder %v483, 0
    %vm492 = vmand %vm488, %vm484
    %vm493 = vmand %vm489, %vm485
    %vm494 = vmand %vm490, %vm486
    %vm495 = vmand %vm491, %vm487
    %v496 = vadd.s32 %v462, 128
    %v497 = vadd.s32 %v469, 128
    %v498 = vadd.s32 %v476, 128
    %v499 = vadd.s32 %v483, 128
    %v500 = vsel %vm492, %v496, %v462
    %v501 = vsel %vm493, %v497, %v469
    %v502 = vsel %vm494, %v498, %v476
    %v503 = vsel %vm495, %v499, %v483
    %vm504 = vcmp.lt.s32.totalorder %v500, 64
    %vm505 = vcmp.lt.s32.totalorder %v501, 64
    %vm506 = vcmp.lt.s32.totalorder %v502, 64
    %vm507 = vcmp.lt.s32.totalorder %v503, 64
    %v508 = vsel %vm504, 1, 0
    %v509 = vsel %vm505, 1, 0
    %v510 = vsel %vm506, 1, 0
    %v511 = vsel %vm507, 1, 0
    %vm512 = vcmp.eq.s32.totalorder %v508, 1
    %vm513 = vcmp.eq.s32.totalorder %v509, 1
    %vm514 = vcmp.eq.s32.totalorder %v510, 1
    %vm515 = vcmp.eq.s32.totalorder %v511, 1
    %v520 = vrot.slane %v372, 6
    %v521 = vrot.slane %v374, 6
    %v522 = vrot.slane %v449, 6
    %v523 = vrot.slane %v451, 6
    %v528 = vsel %vm512, %v366, %v520
    %v529 = vsel %vm513, %v368, %v521
    %v530 = vsel %vm514, %v443, %v522
    %v531 = vsel %vm515, %v445, %v523
    %v532 = vrot.slane %v372, 2
    %v533 = vrot.slane %v374, 2
    %v534 = vrot.slane %v449, 2
    %v535 = vrot.slane %v451, 2
    %v540 = vsel %vm512, %v366, %v532
    %v541 = vsel %vm513, %v368, %v533
    %v542 = vsel %vm514, %v443, %v534
    %v543 = vsel %vm515, %v445, %v535
    %v548 = vrot.slane %v366, 6
    %v549 = vrot.slane %v368, 6
    %v550 = vrot.slane %v443, 6
    %v551 = vrot.slane %v445, 6
    %v556 = vsel %vm512, %v372, %v548
    %v557 = vsel %vm513, %v374, %v549
    %v558 = vsel %vm514, %v449, %v550
    %v559 = vsel %vm515, %v451, %v551
    %v560 = vrot.slane %v366, 2
    %v561 = vrot.slane %v368, 2
    %v562 = vrot.slane %v443, 2
    %v563 = vrot.slane %v445, 2
    %v568 = vsel %vm512, %v372, %v560
    %v569 = vsel %vm513, %v374, %v561
    %v570 = vsel %vm514, %v449, %v562
    %v571 = vsel %vm515, %v451, %v563
    %v572 = vld [vmem:[%s4] sm:$0xff]
    %v573 = vld [vmem:[%s4 + $0x8] sm:$0xff]
    %v574 = vld [vmem:[%s4 + $0x10] sm:$0xff]
    %v575 = vld [vmem:[%s4 + $0x18] sm:$0xff]
    %v576 = vld [vmem:[%s4 + $0x20] sm:$0xff]
    %v577 = vld [vmem:[%s4 + $0x28] sm:$0xff]
    %v578 = vld [vmem:[%s4 + $0x30] sm:$0xff]
    %v579 = vld [vmem:[%s4 + $0x38] sm:$0xff]
    %v580 = vld [vmem:[%s4 + $0x40] sm:$0xff]
    %v581 = vld [vmem:[%s4 + $0x48] sm:$0xff]
    %v582 = vld [vmem:[%s4 + $0x50] sm:$0xff]
    %v583 = vld [vmem:[%s4 + $0x58] sm:$0xff]
    %v584 = vld [vmem:[%s4 + $0x60] sm:$0xff]
    %v585 = vld [vmem:[%s4 + $0x68] sm:$0xff]
    %v586 = vld [vmem:[%s4 + $0x70] sm:$0xff]
    %v587 = vld [vmem:[%s4 + $0x78] sm:$0xff]
    %v588 = vld [vmem:[%s4 + $0x80] sm:$0xff]
    %v589 = vld [vmem:[%s4 + $0x88] sm:$0xff]
    %v590 = vld [vmem:[%s4 + $0x90] sm:$0xff]
    %v591 = vld [vmem:[%s4 + $0x98] sm:$0xff]
    %v592 = vld [vmem:[%s4 + $0xa0] sm:$0xff]
    %v593 = vld [vmem:[%s4 + $0xa8] sm:$0xff]
    %v594 = vld [vmem:[%s4 + $0xb0] sm:$0xff]
    %v595 = vld [vmem:[%s4 + $0xb8] sm:$0xff]
    %v596 = vld [vmem:[%s4 + $0xc0] sm:$0xff]
    %v597 = vld [vmem:[%s4 + $0xc8] sm:$0xff]
    %v598 = vld [vmem:[%s4 + $0xd0] sm:$0xff]
    %v599 = vld [vmem:[%s4 + $0xd8] sm:$0xff]
    %v600 = vld [vmem:[%s4 + $0xe0] sm:$0xff]
    %v601 = vld [vmem:[%s4 + $0xe8] sm:$0xff]
    %v602 = vld [vmem:[%s4 + $0xf0] sm:$0xff]
    %v603 = vld [vmem:[%s4 + $0xf8] sm:$0xff]
    %v636 = vunpack.c.l.b16 %v572
    %v637 = vunpack.c.h.b16 %v572
    %v638 = vunpack.c.l.b16 %v573
    %v639 = vunpack.c.h.b16 %v573
    %v640 = vunpack.c.l.b16 %v574
    %v641 = vunpack.c.h.b16 %v574
    %v642 = vunpack.c.l.b16 %v575
    %v643 = vunpack.c.h.b16 %v575
    %v644 = vunpack.c.l.b16 %v576
    %v645 = vunpack.c.h.b16 %v576
    %v646 = vunpack.c.l.b16 %v577
    %v647 = vunpack.c.h.b16 %v577
    %v648 = vunpack.c.l.b16 %v578
    %v649 = vunpack.c.h.b16 %v578
    %v650 = vunpack.c.l.b16 %v579
    %v651 = vunpack.c.h.b16 %v579
    %v652 = vunpack.c.l.b16 %v580
    %v653 = vunpack.c.h.b16 %v580
    %v654 = vunpack.c.l.b16 %v581
    %v655 = vunpack.c.h.b16 %v581
    %v656 = vunpack.c.l.b16 %v582
    %v657 = vunpack.c.h.b16 %v582
    %v658 = vunpack.c.l.b16 %v583
    %v659 = vunpack.c.h.b16 %v583
    %v660 = vunpack.c.l.b16 %v584
    %v661 = vunpack.c.h.b16 %v584
    %v662 = vunpack.c.l.b16 %v585
    %v663 = vunpack.c.h.b16 %v585
    %v664 = vunpack.c.l.b16 %v586
    %v665 = vunpack.c.h.b16 %v586
    %v666 = vunpack.c.l.b16 %v587
    %v667 = vunpack.c.h.b16 %v587
    %v668 = vunpack.c.l.b16 %v588
    %v669 = vunpack.c.h.b16 %v588
    %v670 = vunpack.c.l.b16 %v589
    %v671 = vunpack.c.h.b16 %v589
    %v672 = vunpack.c.l.b16 %v590
    %v673 = vunpack.c.h.b16 %v590
    %v674 = vunpack.c.l.b16 %v591
    %v675 = vunpack.c.h.b16 %v591
    %v676 = vunpack.c.l.b16 %v592
    %v677 = vunpack.c.h.b16 %v592
    %v678 = vunpack.c.l.b16 %v593
    %v679 = vunpack.c.h.b16 %v593
    %v680 = vunpack.c.l.b16 %v594
    %v681 = vunpack.c.h.b16 %v594
    %v682 = vunpack.c.l.b16 %v595
    %v683 = vunpack.c.h.b16 %v595
    %v684 = vunpack.c.l.b16 %v596
    %v685 = vunpack.c.h.b16 %v596
    %v686 = vunpack.c.l.b16 %v597
    %v687 = vunpack.c.h.b16 %v597
    %v688 = vunpack.c.l.b16 %v598
    %v689 = vunpack.c.h.b16 %v598
    %v690 = vunpack.c.l.b16 %v599
    %v691 = vunpack.c.h.b16 %v599
    %v692 = vunpack.c.l.b16 %v600
    %v693 = vunpack.c.h.b16 %v600
    %v694 = vunpack.c.l.b16 %v601
    %v695 = vunpack.c.h.b16 %v601
    %v696 = vunpack.c.l.b16 %v602
    %v697 = vunpack.c.h.b16 %v602
    %v698 = vunpack.c.l.b16 %v603
    %v699 = vunpack.c.h.b16 %v603
    %v700 = vpack.c.b16 %v640, %v636
    %v701 = vpack.c.b16 %v641, %v637
    %v702 = vpack.c.b16 %v642, %v638
    %v703 = vpack.c.b16 %v643, %v639
    %v704 = vpack.c.b16 %v648, %v644
    %v705 = vpack.c.b16 %v649, %v645
    %v706 = vpack.c.b16 %v650, %v646
    %v707 = vpack.c.b16 %v651, %v647
    %v708 = vpack.c.b16 %v656, %v652
    %v709 = vpack.c.b16 %v657, %v653
    %v710 = vpack.c.b16 %v658, %v654
    %v711 = vpack.c.b16 %v659, %v655
    %v712 = vpack.c.b16 %v664, %v660
    %v713 = vpack.c.b16 %v665, %v661
    %v714 = vpack.c.b16 %v666, %v662
    %v715 = vpack.c.b16 %v667, %v663
    %v716 = vpack.c.b16 %v672, %v668
    %v717 = vpack.c.b16 %v673, %v669
    %v718 = vpack.c.b16 %v674, %v670
    %v719 = vpack.c.b16 %v675, %v671
    %v720 = vpack.c.b16 %v680, %v676
    %v721 = vpack.c.b16 %v681, %v677
    %v722 = vpack.c.b16 %v682, %v678
    %v723 = vpack.c.b16 %v683, %v679
    %v724 = vpack.c.b16 %v688, %v684
    %v725 = vpack.c.b16 %v689, %v685
    %v726 = vpack.c.b16 %v690, %v686
    %v727 = vpack.c.b16 %v691, %v687
    %v728 = vpack.c.b16 %v696, %v692
    %v729 = vpack.c.b16 %v697, %v693
    %v730 = vpack.c.b16 %v698, %v694
    %v731 = vpack.c.b16 %v699, %v695
    %764 = vmatprep.subr.bf16.mxu0 %v701
    %765 = vmatpush1.bf16.msra.mxu0 %v700
    %766 = vmatprep.subr.bf16.mxu0 %v705
    %767 = vmatpush1.bf16.msra.mxu0 %v704
    %768 = vmatprep.subr.bf16.mxu0 %v709
    %769 = vmatpush1.bf16.msra.mxu0 %v708
    %770 = vmatprep.subr.bf16.mxu0 %v713
    %771 = vmatpush1.bf16.msra.mxu0 %v712
    %772 = vmatprep.subr.bf16.mxu0 %v717
    %773 = vmatpush1.bf16.msra.mxu0 %v716
    %774 = vmatprep.subr.bf16.mxu0 %v721
    %775 = vmatpush1.bf16.msra.mxu0 %v720
    %776 = vmatprep.subr.bf16.mxu0 %v725
    %777 = vmatpush1.bf16.msra.mxu0 %v724
    %778 = vmatprep.subr.bf16.mxu0 %v729
    %779 = vmatpush1.bf16.msra.mxu0 %v728
    %780 = vmatprep.subr.bf16.mxu0 0
    %781 = vmatpush1.bf16.msra.mxu0 0
    %782 = vmatprep.subr.bf16.mxu0 0
    %783 = vmatpush1.bf16.msra.mxu0 0
    %784 = vmatprep.subr.bf16.mxu0 0
    %785 = vmatpush1.bf16.msra.mxu0 0
    %786 = vmatprep.subr.bf16.mxu0 0
    %787 = vmatpush1.bf16.msra.mxu0 0
    %788 = vmatprep.subr.bf16.mxu0 0
    %789 = vmatpush1.bf16.msra.mxu0 0
    %790 = vmatprep.subr.bf16.mxu0 0
    %791 = vmatpush1.bf16.msra.mxu0 0
    %792 = vmatprep.subr.bf16.mxu0 0
    %793 = vmatpush1.bf16.msra.mxu0 0
    %794 = vmatprep.subr.bf16.mxu0 0
    %795 = vmatpush1.bf16.msra.mxu0 0
    %796 = vmatprep.mubr.bf16.mxu0 0
    %797 = vmatmul.mubr.bf16.gmra.mrb[0].mxu0 0
    %v798 = vpop.f32.mrb[0].mxu0
    %v799 = vadd.f32 0.0, %v798
    %v800 = vpop.f32.mrb[0].mxu0
    %v801 = vadd.f32 0.0, %v800
    %v802 = vpop.f32.mrb[0].mxu0
    %v803 = vpop.f32.mrb[0].mxu0
    %804 = vdwg.mxu0
    %805 = vmatprep.subr.bf16.mxu0 %v703
    %806 = vmatpush1.bf16.msra.mxu0 %v702
    %807 = vmatprep.subr.bf16.mxu0 %v707
    %808 = vmatpush1.bf16.msra.mxu0 %v706
    %809 = vmatprep.subr.bf16.mxu0 %v711
    %810 = vmatpush1.bf16.msra.mxu0 %v710
    %811 = vmatprep.subr.bf16.mxu0 %v715
    %812 = vmatpush1.bf16.msra.mxu0 %v714
    %813 = vmatprep.subr.bf16.mxu0 %v719
    %814 = vmatpush1.bf16.msra.mxu0 %v718
    %815 = vmatprep.subr.bf16.mxu0 %v723
    %816 = vmatpush1.bf16.msra.mxu0 %v722
    %817 = vmatprep.subr.bf16.mxu0 %v727
    %818 = vmatpush1.bf16.msra.mxu0 %v726
    %819 = vmatprep.subr.bf16.mxu0 %v731
    %820 = vmatpush1.bf16.msra.mxu0 %v730
    %821 = vmatprep.subr.bf16.mxu0 0
    %822 = vmatpush1.bf16.msra.mxu0 0
    %823 = vmatprep.subr.bf16.mxu0 0
    %824 = vmatpush1.bf16.msra.mxu0 0
    %825 = vmatprep.subr.bf16.mxu0 0
    %826 = vmatpush1.bf16.msra.mxu0 0
    %827 = vmatprep.subr.bf16.mxu0 0
    %828 = vmatpush1.bf16.msra.mxu0 0
    %829 = vmatprep.subr.bf16.mxu0 0
    %830 = vmatpush1.bf16.msra.mxu0 0
    %831 = vmatprep.subr.bf16.mxu0 0
    %832 = vmatpush1.bf16.msra.mxu0 0
    %833 = vmatprep.subr.bf16.mxu0 0
    %834 = vmatpush1.bf16.msra.mxu0 0
    %835 = vmatprep.subr.bf16.mxu0 0
    %836 = vmatpush1.bf16.msra.mxu0 0
    %837 = vmatprep.mubr.bf16.mxu0 0
    %838 = vmatmul.mubr.bf16.gmra.mrb[0].mxu0 0
    %v839 = vpop.f32.mrb[0].mxu0
    %v840 = vadd.f32 0.0, %v839
    %v841 = vpop.f32.mrb[0].mxu0
    %v842 = vadd.f32 0.0, %v841
    %v843 = vpop.f32.mrb[0].mxu0
    %v844 = vpop.f32.mrb[0].mxu0
    %845 = vdwg.mxu0
    %v846 = vadd.f32 %v528, %v799
    %v847 = vadd.f32 %v529, %v801
    %v848 = vadd.f32 %v530, %v840
    %v849 = vadd.f32 %v531, %v842
    %v850 = vxor.u32 %v846, 2147483648
    %v851 = vxor.u32 %v847, 2147483648
    %v852 = vxor.u32 %v848, 2147483648
    %v853 = vmul.f32 %v850, 1.442695
    %v854 = vpow.pop %v853
    %v855 = vmul.f32 %v851, 1.442695
    %v856 = vpow.pop %v855
    %v857 = vmul.f32 %v852, 1.442695
    %v858 = vpow.pop %v857
    %v859 = vadd.f32 %v854, 1.0
    %v860 = vadd.f32 %v856, 1.0
    %v861 = vadd.f32 %v858, 1.0
    %v862 = vrcp.pop %v859
    %v863 = vmul.f32 1.0, %v862
    %v864 = vrcp.pop %v860
    %v865 = vmul.f32 1.0, %v864
    %v866 = vrcp.pop %v861
    %v867 = vmul.f32 1.0, %v866
    %v868 = vtanh.pop %v849
    %v869 = vmul.f32 %v865, 0.0
    %v870 = vmul.f32 %v863, %v868
    %v871 = vadd.f32 %v869, %v870
    %v872 = vtanh.pop %v871
    %v873 = vmul.f32 %v867, %v872
    %v874 = vpack.c.bf16 %v873, %v873
    %875 = vmatprep.subr.bf16.mxu0 %v701
    %876 = vmatpush1.bf16.msra.mxu0 %v700
    %877 = vmatprep.subr.bf16.mxu0 %v705
    %878 = vmatpush1.bf16.msra.mxu0 %v704
    %879 = vmatprep.subr.bf16.mxu0 %v709
    %880 = vmatpush1.bf16.msra.mxu0 %v708
    %881 = vmatprep.subr.bf16.mxu0 %v713
    %882 = vmatpush1.bf16.msra.mxu0 %v712
    %883 = vmatprep.subr.bf16.mxu0 %v717
    %884 = vmatpush1.bf16.msra.mxu0 %v716
    %885 = vmatprep.subr.bf16.mxu0 %v721
    %886 = vmatpush1.bf16.msra.mxu0 %v720
    %887 = vmatprep.subr.bf16.mxu0 %v725
    %888 = vmatpush1.bf16.msra.mxu0 %v724
    %889 = vmatprep.subr.bf16.mxu0 %v729
    %890 = vmatpush1.bf16.msra.mxu0 %v728
    %891 = vmatprep.subr.bf16.mxu0 0
    %892 = vmatpush1.bf16.msra.mxu0 0
    %893 = vmatprep.subr.bf16.mxu0 0
    %894 = vmatpush1.bf16.msra.mxu0 0
    %895 = vmatprep.subr.bf16.mxu0 0
    %896 = vmatpush1.bf16.msra.mxu0 0
    %897 = vmatprep.subr.bf16.mxu0 0
    %898 = vmatpush1.bf16.msra.mxu0 0
    %899 = vmatprep.subr.bf16.mxu0 0
    %900 = vmatpush1.bf16.msra.mxu0 0
    %901 = vmatprep.subr.bf16.mxu0 0
    %902 = vmatpush1.bf16.msra.mxu0 0
    %903 = vmatprep.subr.bf16.mxu0 0
    %904 = vmatpush1.bf16.msra.mxu0 0
    %905 = vmatprep.subr.bf16.mxu0 0
    %906 = vmatpush1.bf16.msra.mxu0 0
    %907 = vmatprep.mubr.bf16.mxu0 0
    %908 = vmatmul.mubr.bf16.gmra.mrb[0].mxu0 %v874
    %v909 = vpop.f32.mrb[0].mxu0
    %v910 = vadd.f32 0.0, %v909
    %v911 = vpop.f32.mrb[0].mxu0
    %v912 = vadd.f32 0.0, %v911
    %v913 = vpop.f32.mrb[0].mxu0
    %v914 = vpop.f32.mrb[0].mxu0
    %915 = vdwg.mxu0
    %916 = vmatprep.subr.bf16.mxu0 %v703
    %917 = vmatpush1.bf16.msra.mxu0 %v702
    %918 = vmatprep.subr.bf16.mxu0 %v707
    %919 = vmatpush1.bf16.msra.mxu0 %v706
    %920 = vmatprep.subr.bf16.mxu0 %v711
    %921 = vmatpush1.bf16.msra.mxu0 %v710
    %922 = vmatprep.subr.bf16.mxu0 %v715
    %923 = vmatpush1.bf16.msra.mxu0 %v714
    %924 = vmatprep.subr.bf16.mxu0 %v719
    %925 = vmatpush1.bf16.msra.mxu0 %v718
    %926 = vmatprep.subr.bf16.mxu0 %v723
    %927 = vmatpush1.bf16.msra.mxu0 %v722
    %928 = vmatprep.subr.bf16.mxu0 %v727
    %929 = vmatpush1.bf16.msra.mxu0 %v726
    %930 = vmatprep.subr.bf16.mxu0 %v731
    %931 = vmatpush1.bf16.msra.mxu0 %v730
    %932 = vmatprep.subr.bf16.mxu0 0
    %933 = vmatpush1.bf16.msra.mxu0 0
    %934 = vmatprep.subr.bf16.mxu0 0
    %935 = vmatpush1.bf16.msra.mxu0 0
    %936 = vmatprep.subr.bf16.mxu0 0
    %937 = vmatpush1.bf16.msra.mxu0 0
    %938 = vmatprep.subr.bf16.mxu0 0
    %939 = vmatpush1.bf16.msra.mxu0 0
    %940 = vmatprep.subr.bf16.mxu0 0
    %941 = vmatpush1.bf16.msra.mxu0 0
    %942 = vmatprep.subr.bf16.mxu0 0
    %943 = vmatpush1.bf16.msra.mxu0 0
    %944 = vmatprep.subr.bf16.mxu0 0
    %945 = vmatpush1.bf16.msra.mxu0 0
    %946 = vmatprep.subr.bf16.mxu0 0
    %947 = vmatpush1.bf16.msra.mxu0 0
    %948 = vmatprep.mubr.bf16.mxu0 0
    %949 = vmatmul.mubr.bf16.gmra.mrb[0].mxu0 %v874
    %v950 = vpop.f32.mrb[0].mxu0
    %v951 = vadd.f32 0.0, %v950
    %v952 = vpop.f32.mrb[0].mxu0
    %v953 = vadd.f32 0.0, %v952
    %v954 = vpop.f32.mrb[0].mxu0
    %v955 = vpop.f32.mrb[0].mxu0
    %956 = vdwg.mxu0
    %v961 = vrot.slane %v910, 6
    %v962 = vrot.slane %v912, 6
    %v963 = vrot.slane %v951, 6
    %v964 = vrot.slane %v953, 6
    %v969 = vadd.f32 %v540, %v961
    %v970 = vadd.f32 %v541, %v962
    %v971 = vadd.f32 %v542, %v963
    %v972 = vadd.f32 %v543, %v964
    %v973 = vxor.u32 %v969, 2147483648
    %v974 = vxor.u32 %v970, 2147483648
    %v975 = vxor.u32 %v971, 2147483648
    %v976 = vmul.f32 %v973, 1.442695
    %v977 = vpow.pop %v976
    %v978 = vmul.f32 %v974, 1.442695
    %v979 = vpow.pop %v978
    %v980 = vmul.f32 %v975, 1.442695
    %v981 = vpow.pop %v980
    %v982 = vadd.f32 %v977, 1.0
    %v983 = vadd.f32 %v979, 1.0
    %v984 = vadd.f32 %v981, 1.0
    %v985 = vrcp.pop %v982
    %v986 = vmul.f32 1.0, %v985
    %v987 = vrcp.pop %v983
    %v988 = vmul.f32 1.0, %v987
    %v989 = vrcp.pop %v984
    %v990 = vmul.f32 1.0, %v989
    %v991 = vtanh.pop %v972
    %v993 = vrot.slane %v871, 6
    %v995 = vmul.f32 %v988, %v993
    %v996 = vmul.f32 %v986, %v991
    %v997 = vadd.f32 %v995, %v996
    %v998 = vtanh.pop %v997
    %v999 = vmul.f32 %v990, %v998
    %v1000 = vpack.c.bf16 %v999, %v999
    %v1002 = vrot.slane %v1000, 1
    %1004 = vmatprep.subr.bf16.mxu0 %v701
    %1005 = vmatpush1.bf16.msra.mxu0 %v700
    %1006 = vmatprep.subr.bf16.mxu0 %v705
    %1007 = vmatpush1.bf16.msra.mxu0 %v704
    %1008 = vmatprep.subr.bf16.mxu0 %v709
    %1009 = vmatpush1.bf16.msra.mxu0 %v708
    %1010 = vmatprep.subr.bf16.mxu0 %v713
    %1011 = vmatpush1.bf16.msra.mxu0 %v712
    %1012 = vmatprep.subr.bf16.mxu0 %v717
    %1013 = vmatpush1.bf16.msra.mxu0 %v716
    %1014 = vmatprep.subr.bf16.mxu0 %v721
    %1015 = vmatpush1.bf16.msra.mxu0 %v720
    %1016 = vmatprep.subr.bf16.mxu0 %v725
    %1017 = vmatpush1.bf16.msra.mxu0 %v724
    %1018 = vmatprep.subr.bf16.mxu0 %v729
    %1019 = vmatpush1.bf16.msra.mxu0 %v728
    %1020 = vmatprep.subr.bf16.mxu0 0
    %1021 = vmatpush1.bf16.msra.mxu0 0
    %1022 = vmatprep.subr.bf16.mxu0 0
    %1023 = vmatpush1.bf16.msra.mxu0 0
    %1024 = vmatprep.subr.bf16.mxu0 0
    %1025 = vmatpush1.bf16.msra.mxu0 0
    %1026 = vmatprep.subr.bf16.mxu0 0
    %1027 = vmatpush1.bf16.msra.mxu0 0
    %1028 = vmatprep.subr.bf16.mxu0 0
    %1029 = vmatpush1.bf16.msra.mxu0 0
    %1030 = vmatprep.subr.bf16.mxu0 0
    %1031 = vmatpush1.bf16.msra.mxu0 0
    %1032 = vmatprep.subr.bf16.mxu0 0
    %1033 = vmatpush1.bf16.msra.mxu0 0
    %1034 = vmatprep.subr.bf16.mxu0 0
    %1035 = vmatpush1.bf16.msra.mxu0 0
    %1036 = vmatprep.mubr.bf16.mxu0 0
    %1037 = vmatmul.mubr.bf16.gmra.mrb[0].mxu0 %v1002
    %v1038 = vpop.f32.mrb[0].mxu0
    %v1039 = vadd.f32 0.0, %v1038
    %v1040 = vpop.f32.mrb[0].mxu0
    %v1041 = vadd.f32 0.0, %v1040
    %v1042 = vpop.f32.mrb[0].mxu0
    %v1043 = vpop.f32.mrb[0].mxu0
    %1044 = vdwg.mxu0
    %1045 = vmatprep.subr.bf16.mxu0 %v703
    %1046 = vmatpush1.bf16.msra.mxu0 %v702
    %1047 = vmatprep.subr.bf16.mxu0 %v707
    %1048 = vmatpush1.bf16.msra.mxu0 %v706
    %1049 = vmatprep.subr.bf16.mxu0 %v711
    %1050 = vmatpush1.bf16.msra.mxu0 %v710
    %1051 = vmatprep.subr.bf16.mxu0 %v715
    %1052 = vmatpush1.bf16.msra.mxu0 %v714
    %1053 = vmatprep.subr.bf16.mxu0 %v719
    %1054 = vmatpush1.bf16.msra.mxu0 %v718
    %1055 = vmatprep.subr.bf16.mxu0 %v723
    %1056 = vmatpush1.bf16.msra.mxu0 %v722
    %1057 = vmatprep.subr.bf16.mxu0 %v727
    %1058 = vmatpush1.bf16.msra.mxu0 %v726
    %1059 = vmatprep.subr.bf16.mxu0 %v731
    %1060 = vmatpush1.bf16.msra.mxu0 %v730
    %1061 = vmatprep.subr.bf16.mxu0 0
    %1062 = vmatpush1.bf16.msra.mxu0 0
    %1063 = vmatprep.subr.bf16.mxu0 0
    %1064 = vmatpush1.bf16.msra.mxu0 0
    %1065 = vmatprep.subr.bf16.mxu0 0
    %1066 = vmatpush1.bf16.msra.mxu0 0
    %1067 = vmatprep.subr.bf16.mxu0 0
    %1068 = vmatpush1.bf16.msra.mxu0 0
    %1069 = vmatprep.subr.bf16.mxu0 0
    %1070 = vmatpush1.bf16.msra.mxu0 0
    %1071 = vmatprep.subr.bf16.mxu0 0
    %1072 = vmatpush1.bf16.msra.mxu0 0
    %1073 = vmatprep.subr.bf16.mxu0 0
    %1074 = vmatpush1.bf16.msra.mxu0 0
    %1075 = vmatprep.subr.bf16.mxu0 0
    %1076 = vmatpush1.bf16.msra.mxu0 0
    %1077 = vmatprep.mubr.bf16.mxu0 0
    %1078 = vmatmul.mubr.bf16.gmra.mrb[0].mxu0 %v1002
    %v1079 = vpop.f32.mrb[0].mxu0
    %v1080 = vadd.f32 0.0, %v1079
    %v1081 = vpop.f32.mrb[0].mxu0
    %v1082 = vadd.f32 0.0, %v1081
    %v1083 = vpop.f32.mrb[0].mxu0
    %v1084 = vpop.f32.mrb[0].mxu0
    %1085 = vdwg.mxu0
    %v1090 = vrot.slane %v1039, 4
    %v1091 = vrot.slane %v1041, 4
    %v1092 = vrot.slane %v1080, 4
    %v1093 = vrot.slane %v1082, 4
    %v1098 = vadd.f32 %v528, %v1090
    %v1099 = vadd.f32 %v529, %v1091
    %v1100 = vadd.f32 %v530, %v1092
    %v1101 = vadd.f32 %v531, %v1093
    %v1102 = vxor.u32 %v1098, 2147483648
    %v1103 = vxor.u32 %v1099, 2147483648
    %v1104 = vxor.u32 %v1100, 2147483648
    %v1105 = vmul.f32 %v1102, 1.442695
    %v1106 = vpow.pop %v1105
    %v1107 = vmul.f32 %v1103, 1.442695
    %v1108 = vpow.pop %v1107
    %v1109 = vmul.f32 %v1104, 1.442695
    %v1110 = vpow.pop %v1109
    %v1111 = vadd.f32 %v1106, 1.0
    %v1112 = vadd.f32 %v1108, 1.0
    %v1113 = vadd.f32 %v1110, 1.0
    %v1114 = vrcp.pop %v1111
    %v1115 = vmul.f32 1.0, %v1114
    %v1116 = vrcp.pop %v1112
    %v1117 = vmul.f32 1.0, %v1116
    %v1118 = vrcp.pop %v1113
    %v1119 = vmul.f32 1.0, %v1118
    %v1120 = vtanh.pop %v1101
    %v1122 = vrot.slane %v997, 6
    %v1124 = vmul.f32 %v1117, %v1122
    %v1125 = vmul.f32 %v1115, %v1120
    %v1126 = vadd.f32 %v1124, %v1125
    %v1127 = vtanh.pop %v1126
    %v1128 = vmul.f32 %v1119, %v1127
    %v1129 = vpack.c.bf16 %v1128, %v1128
    %v1131 = vrot.slane %v1129, 2
    %1133 = vmatprep.subr.bf16.mxu0 %v701
    %1134 = vmatpush1.bf16.msra.mxu0 %v700
    %1135 = vmatprep.subr.bf16.mxu0 %v705
    %1136 = vmatpush1.bf16.msra.mxu0 %v704
    %1137 = vmatprep.subr.bf16.mxu0 %v709
    %1138 = vmatpush1.bf16.msra.mxu0 %v708
    %1139 = vmatprep.subr.bf16.mxu0 %v713
    %1140 = vmatpush1.bf16.msra.mxu0 %v712
    %1141 = vmatprep.subr.bf16.mxu0 %v717
    %1142 = vmatpush1.bf16.msra.mxu0 %v716
    %1143 = vmatprep.subr.bf16.mxu0 %v721
    %1144 = vmatpush1.bf16.msra.mxu0 %v720
    %1145 = vmatprep.subr.bf16.mxu0 %v725
    %1146 = vmatpush1.bf16.msra.mxu0 %v724
    %1147 = vmatprep.subr.bf16.mxu0 %v729
    %1148 = vmatpush1.bf16.msra.mxu0 %v728
    %1149 = vmatprep.subr.bf16.mxu0 0
    %1150 = vmatpush1.bf16.msra.mxu0 0
    %1151 = vmatprep.subr.bf16.mxu0 0
    %1152 = vmatpush1.bf16.msra.mxu0 0
    %1153 = vmatprep.subr.bf16.mxu0 0
    %1154 = vmatpush1.bf16.msra.mxu0 0
    %1155 = vmatprep.subr.bf16.mxu0 0
    %1156 = vmatpush1.bf16.msra.mxu0 0
    %1157 = vmatprep.subr.bf16.mxu0 0
    %1158 = vmatpush1.bf16.msra.mxu0 0
    %1159 = vmatprep.subr.bf16.mxu0 0
    %1160 = vmatpush1.bf16.msra.mxu0 0
    %1161 = vmatprep.subr.bf16.mxu0 0
    %1162 = vmatpush1.bf16.msra.mxu0 0
    %1163 = vmatprep.subr.bf16.mxu0 0
    %1164 = vmatpush1.bf16.msra.mxu0 0
    %1165 = vmatprep.mubr.bf16.mxu0 0
    %1166 = vmatmul.mubr.bf16.gmra.mrb[0].mxu0 %v1131
    %v1167 = vpop.f32.mrb[0].mxu0
    %v1168 = vadd.f32 0.0, %v1167
    %v1169 = vpop.f32.mrb[0].mxu0
    %v1170 = vadd.f32 0.0, %v1169
    %v1171 = vpop.f32.mrb[0].mxu0
    %v1172 = vpop.f32.mrb[0].mxu0
    %1173 = vdwg.mxu0
    %1174 = vmatprep.subr.bf16.mxu0 %v703
    %1175 = vmatpush1.bf16.msra.mxu0 %v702
    %1176 = vmatprep.subr.bf16.mxu0 %v707
    %1177 = vmatpush1.bf16.msra.mxu0 %v706
    %1178 = vmatprep.subr.bf16.mxu0 %v711
    %1179 = vmatpush1.bf16.msra.mxu0 %v710
    %1180 = vmatprep.subr.bf16.mxu0 %v715
    %1181 = vmatpush1.bf16.msra.mxu0 %v714
    %1182 = vmatprep.subr.bf16.mxu0 %v719
    %1183 = vmatpush1.bf16.msra.mxu0 %v718
    %1184 = vmatprep.subr.bf16.mxu0 %v723
    %1185 = vmatpush1.bf16.msra.mxu0 %v722
    %1186 = vmatprep.subr.bf16.mxu0 %v727
    %1187 = vmatpush1.bf16.msra.mxu0 %v726
    %1188 = vmatprep.subr.bf16.mxu0 %v731
    %1189 = vmatpush1.bf16.msra.mxu0 %v730
    %1190 = vmatprep.subr.bf16.mxu0 0
    %1191 = vmatpush1.bf16.msra.mxu0 0
    %1192 = vmatprep.subr.bf16.mxu0 0
    %1193 = vmatpush1.bf16.msra.mxu0 0
    %1194 = vmatprep.subr.bf16.mxu0 0
    %1195 = vmatpush1.bf16.msra.mxu0 0
    %1196 = vmatprep.subr.bf16.mxu0 0
    %1197 = vmatpush1.bf16.msra.mxu0 0
    %1198 = vmatprep.subr.bf16.mxu0 0
    %1199 = vmatpush1.bf16.msra.mxu0 0
    %1200 = vmatprep.subr.bf16.mxu0 0
    %1201 = vmatpush1.bf16.msra.mxu0 0
    %1202 = vmatprep.subr.bf16.mxu0 0
    %1203 = vmatpush1.bf16.msra.mxu0 0
    %1204 = vmatprep.subr.bf16.mxu0 0
    %1205 = vmatpush1.bf16.msra.mxu0 0
    %1206 = vmatprep.mubr.bf16.mxu0 0
    %1207 = vmatmul.mubr.bf16.gmra.mrb[0].mxu0 %v1131
    %v1208 = vpop.f32.mrb[0].mxu0
    %v1209 = vadd.f32 0.0, %v1208
    %v1210 = vpop.f32.mrb[0].mxu0
    %v1211 = vadd.f32 0.0, %v1210
    %v1212 = vpop.f32.mrb[0].mxu0
    %v1213 = vpop.f32.mrb[0].mxu0
    %1214 = vdwg.mxu0
    %v1219 = vrot.slane %v1168, 2
    %v1220 = vrot.slane %v1170, 2
    %v1221 = vrot.slane %v1209, 2
    %v1222 = vrot.slane %v1211, 2
    %v1227 = vadd.f32 %v540, %v1219
    %v1228 = vadd.f32 %v541, %v1220
    %v1229 = vadd.f32 %v542, %v1221
    %v1230 = vadd.f32 %v543, %v1222
    %v1231 = vxor.u32 %v1227, 2147483648
    %v1232 = vxor.u32 %v1228, 2147483648
    %v1233 = vxor.u32 %v1229, 2147483648
    %v1234 = vmul.f32 %v1231, 1.442695
    %v1235 = vpow.pop %v1234
    %v1236 = vmul.f32 %v1232, 1.442695
    %v1237 = vpow.pop %v1236
    %v1238 = vmul.f32 %v1233, 1.442695
    %v1239 = vpow.pop %v1238
    %v1240 = vadd.f32 %v1235, 1.0
    %v1241 = vadd.f32 %v1237, 1.0
    %v1242 = vadd.f32 %v1239, 1.0
    %v1243 = vrcp.pop %v1240
    %v1244 = vmul.f32 1.0, %v1243
    %v1245 = vrcp.pop %v1241
    %v1246 = vmul.f32 1.0, %v1245
    %v1247 = vrcp.pop %v1242
    %v1248 = vmul.f32 1.0, %v1247
    %v1249 = vtanh.pop %v1230
    %v1251 = vrot.slane %v1126, 6
    %v1253 = vmul.f32 %v1246, %v1251
    %v1254 = vmul.f32 %v1244, %v1249
    %v1255 = vadd.f32 %v1253, %v1254
    %v1256 = vtanh.pop %v1255
    %v1257 = vmul.f32 %v1248, %v1256
    %v1258 = vpack.c.bf16 %v1257, %v1257
    %v1260 = vrot.slane %v1258, 3
    %1262 = vmatprep.subr.bf16.mxu0 %v701
    %1263 = vmatpush1.bf16.msra.mxu0 %v700
    %1264 = vmatprep.subr.bf16.mxu0 %v705
    %1265 = vmatpush1.bf16.msra.mxu0 %v704
    %1266 = vmatprep.subr.bf16.mxu0 %v709
    %1267 = vmatpush1.bf16.msra.mxu0 %v708
    %1268 = vmatprep.subr.bf16.mxu0 %v713
    %1269 = vmatpush1.bf16.msra.mxu0 %v712
    %1270 = vmatprep.subr.bf16.mxu0 %v717
    %1271 = vmatpush1.bf16.msra.mxu0 %v716
    %1272 = vmatprep.subr.bf16.mxu0 %v721
    %1273 = vmatpush1.bf16.msra.mxu0 %v720
    %1274 = vmatprep.subr.bf16.mxu0 %v725
    %1275 = vmatpush1.bf16.msra.mxu0 %v724
    %1276 = vmatprep.subr.bf16.mxu0 %v729
    %1277 = vmatpush1.bf16.msra.mxu0 %v728
    %1278 = vmatprep.subr.bf16.mxu0 0
    %1279 = vmatpush1.bf16.msra.mxu0 0
    %1280 = vmatprep.subr.bf16.mxu0 0
    %1281 = vmatpush1.bf16.msra.mxu0 0
    %1282 = vmatprep.subr.bf16.mxu0 0
    %1283 = vmatpush1.bf16.msra.mxu0 0
    %1284 = vmatprep.subr.bf16.mxu0 0
    %1285 = vmatpush1.bf16.msra.mxu0 0
    %1286 = vmatprep.subr.bf16.mxu0 0
    %1287 = vmatpush1.bf16.msra.mxu0 0
    %1288 = vmatprep.subr.bf16.mxu0 0
    %1289 = vmatpush1.bf16.msra.mxu0 0
    %1290 = vmatprep.subr.bf16.mxu0 0
    %1291 = vmatpush1.bf16.msra.mxu0 0
    %1292 = vmatprep.subr.bf16.mxu0 0
    %1293 = vmatpush1.bf16.msra.mxu0 0
    %1294 = vmatprep.mubr.bf16.mxu0 0
    %1295 = vmatmul.mubr.bf16.gmra.mrb[0].mxu0 %v1260
    %v1296 = vpop.f32.mrb[0].mxu0
    %v1297 = vadd.f32 0.0, %v1296
    %v1298 = vpop.f32.mrb[0].mxu0
    %v1299 = vadd.f32 0.0, %v1298
    %v1300 = vpop.f32.mrb[0].mxu0
    %v1301 = vpop.f32.mrb[0].mxu0
    %1302 = vdwg.mxu0
    %1303 = vmatprep.subr.bf16.mxu0 %v703
    %1304 = vmatpush1.bf16.msra.mxu0 %v702
    %1305 = vmatprep.subr.bf16.mxu0 %v707
    %1306 = vmatpush1.bf16.msra.mxu0 %v706
    %1307 = vmatprep.subr.bf16.mxu0 %v711
    %1308 = vmatpush1.bf16.msra.mxu0 %v710
    %1309 = vmatprep.subr.bf16.mxu0 %v715
    %1310 = vmatpush1.bf16.msra.mxu0 %v714
    %1311 = vmatprep.subr.bf16.mxu0 %v719
    %1312 = vmatpush1.bf16.msra.mxu0 %v718
    %1313 = vmatprep.subr.bf16.mxu0 %v723
    %1314 = vmatpush1.bf16.msra.mxu0 %v722
    %1315 = vmatprep.subr.bf16.mxu0 %v727
    %1316 = vmatpush1.bf16.msra.mxu0 %v726
    %1317 = vmatprep.subr.bf16.mxu0 %v731
    %1318 = vmatpush1.bf16.msra.mxu0 %v730
    %1319 = vmatprep.subr.bf16.mxu0 0
    %1320 = vmatpush1.bf16.msra.mxu0 0
    %1321 = vmatprep.subr.bf16.mxu0 0
    %1322 = vmatpush1.bf16.msra.mxu0 0
    %1323 = vmatprep.subr.bf16.mxu0 0
    %1324 = vmatpush1.bf16.msra.mxu0 0
    %1325 = vmatprep.subr.bf16.mxu0 0
    %1326 = vmatpush1.bf16.msra.mxu0 0
    %1327 = vmatprep.subr.bf16.mxu0 0
    %1328 = vmatpush1.bf16.msra.mxu0 0
    %1329 = vmatprep.subr.bf16.mxu0 0
    %1330 = vmatpush1.bf16.msra.mxu0 0
    %1331 = vmatprep.subr.bf16.mxu0 0
    %1332 = vmatpush1.bf16.msra.mxu0 0
    %1333 = vmatprep.subr.bf16.mxu0 0
    %1334 = vmatpush1.bf16.msra.mxu0 0
    %1335 = vmatprep.mubr.bf16.mxu0 0
    %1336 = vmatmul.mubr.bf16.gmra.mrb[0].mxu0 %v1260
    %v1337 = vpop.f32.mrb[0].mxu0
    %v1338 = vadd.f32 0.0, %v1337
    %v1339 = vpop.f32.mrb[0].mxu0
    %v1340 = vadd.f32 0.0, %v1339
    %v1341 = vpop.f32.mrb[0].mxu0
    %v1342 = vpop.f32.mrb[0].mxu0
    %1343 = vdwg.mxu0
    %v1344 = vadd.f32 %v556, %v1297
    %v1345 = vadd.f32 %v557, %v1299
    %v1346 = vadd.f32 %v558, %v1338
    %v1347 = vadd.f32 %v559, %v1340
    %v1348 = vxor.u32 %v1344, 2147483648
    %v1349 = vxor.u32 %v1345, 2147483648
    %v1350 = vxor.u32 %v1346, 2147483648
    %v1351 = vmul.f32 %v1348, 1.442695
    %v1352 = vpow.pop %v1351
    %v1353 = vmul.f32 %v1349, 1.442695
    %v1354 = vpow.pop %v1353
    %v1355 = vmul.f32 %v1350, 1.442695
    %v1356 = vpow.pop %v1355
    %v1357 = vadd.f32 %v1352, 1.0
    %v1358 = vadd.f32 %v1354, 1.0
    %v1359 = vadd.f32 %v1356, 1.0
    %v1360 = vrcp.pop %v1357
    %v1361 = vmul.f32 1.0, %v1360
    %v1362 = vrcp.pop %v1358
    %v1363 = vmul.f32 1.0, %v1362
    %v1364 = vrcp.pop %v1359
    %v1365 = vmul.f32 1.0, %v1364
    %v1366 = vtanh.pop %v1347
    %v1368 = vrot.slane %v1255, 6
    %v1370 = vmul.f32 %v1363, %v1368
    %v1371 = vmul.f32 %v1361, %v1366
    %v1372 = vadd.f32 %v1370, %v1371
    %v1373 = vtanh.pop %v1372
    %v1374 = vmul.f32 %v1365, %v1373
    %v1375 = vpack.c.bf16 %v1374, %v1374
    %1376 = vmatprep.subr.bf16.mxu0 %v701
    %1377 = vmatpush1.bf16.msra.mxu0 %v700
    %1378 = vmatprep.subr.bf16.mxu0 %v705
    %1379 = vmatpush1.bf16.msra.mxu0 %v704
    %1380 = vmatprep.subr.bf16.mxu0 %v709
    %1381 = vmatpush1.bf16.msra.mxu0 %v708
    %1382 = vmatprep.subr.bf16.mxu0 %v713
    %1383 = vmatpush1.bf16.msra.mxu0 %v712
    %1384 = vmatprep.subr.bf16.mxu0 %v717
    %1385 = vmatpush1.bf16.msra.mxu0 %v716
    %1386 = vmatprep.subr.bf16.mxu0 %v721
    %1387 = vmatpush1.bf16.msra.mxu0 %v720
    %1388 = vmatprep.subr.bf16.mxu0 %v725
    %1389 = vmatpush1.bf16.msra.mxu0 %v724
    %1390 = vmatprep.subr.bf16.mxu0 %v729
    %1391 = vmatpush1.bf16.msra.mxu0 %v728
    %1392 = vmatprep.subr.bf16.mxu0 0
    %1393 = vmatpush1.bf16.msra.mxu0 0
    %1394 = vmatprep.subr.bf16.mxu0 0
    %1395 = vmatpush1.bf16.msra.mxu0 0
    %1396 = vmatprep.subr.bf16.mxu0 0
    %1397 = vmatpush1.bf16.msra.mxu0 0
    %1398 = vmatprep.subr.bf16.mxu0 0
    %1399 = vmatpush1.bf16.msra.mxu0 0
    %1400 = vmatprep.subr.bf16.mxu0 0
    %1401 = vmatpush1.bf16.msra.mxu0 0
    %1402 = vmatprep.subr.bf16.mxu0 0
    %1403 = vmatpush1.bf16.msra.mxu0 0
    %1404 = vmatprep.subr.bf16.mxu0 0
    %1405 = vmatpush1.bf16.msra.mxu0 0
    %1406 = vmatprep.subr.bf16.mxu0 0
    %1407 = vmatpush1.bf16.msra.mxu0 0
    %1408 = vmatprep.mubr.bf16.mxu0 0
    %1409 = vmatmul.mubr.bf16.gmra.mrb[0].mxu0 %v1375
    %v1410 = vpop.f32.mrb[0].mxu0
    %v1411 = vadd.f32 0.0, %v1410
    %v1412 = vpop.f32.mrb[0].mxu0
    %v1413 = vadd.f32 0.0, %v1412
    %v1414 = vpop.f32.mrb[0].mxu0
    %v1415 = vpop.f32.mrb[0].mxu0
    %1416 = vdwg.mxu0
    %1417 = vmatprep.subr.bf16.mxu0 %v703
    %1418 = vmatpush1.bf16.msra.mxu0 %v702
    %1419 = vmatprep.subr.bf16.mxu0 %v707
    %1420 = vmatpush1.bf16.msra.mxu0 %v706
    %1421 = vmatprep.subr.bf16.mxu0 %v711
    %1422 = vmatpush1.bf16.msra.mxu0 %v710
    %1423 = vmatprep.subr.bf16.mxu0 %v715
    %1424 = vmatpush1.bf16.msra.mxu0 %v714
    %1425 = vmatprep.subr.bf16.mxu0 %v719
    %1426 = vmatpush1.bf16.msra.mxu0 %v718
    %1427 = vmatprep.subr.bf16.mxu0 %v723
    %1428 = vmatpush1.bf16.msra.mxu0 %v722
    %1429 = vmatprep.subr.bf16.mxu0 %v727
    %1430 = vmatpush1.bf16.msra.mxu0 %v726
    %1431 = vmatprep.subr.bf16.mxu0 %v731
    %1432 = vmatpush1.bf16.msra.mxu0 %v730
    %1433 = vmatprep.subr.bf16.mxu0 0
    %1434 = vmatpush1.bf16.msra.mxu0 0
    %1435 = vmatprep.subr.bf16.mxu0 0
    %1436 = vmatpush1.bf16.msra.mxu0 0
    %1437 = vmatprep.subr.bf16.mxu0 0
    %1438 = vmatpush1.bf16.msra.mxu0 0
    %1439 = vmatprep.subr.bf16.mxu0 0
    %1440 = vmatpush1.bf16.msra.mxu0 0
    %1441 = vmatprep.subr.bf16.mxu0 0
    %1442 = vmatpush1.bf16.msra.mxu0 0
    %1443 = vmatprep.subr.bf16.mxu0 0
    %1444 = vmatpush1.bf16.msra.mxu0 0
    %1445 = vmatprep.subr.bf16.mxu0 0
    %1446 = vmatpush1.bf16.msra.mxu0 0
    %1447 = vmatprep.subr.bf16.mxu0 0
    %1448 = vmatpush1.bf16.msra.mxu0 0
    %1449 = vmatprep.mubr.bf16.mxu0 0
    %1450 = vmatmul.mubr.bf16.gmra.mrb[0].mxu0 %v1375
    %v1451 = vpop.f32.mrb[0].mxu0
    %v1452 = vadd.f32 0.0, %v1451
    %v1453 = vpop.f32.mrb[0].mxu0
    %v1454 = vadd.f32 0.0, %v1453
    %v1455 = vpop.f32.mrb[0].mxu0
    %v1456 = vpop.f32.mrb[0].mxu0
    %1457 = vdwg.mxu0
    %v1462 = vrot.slane %v1411, 6
    %v1463 = vrot.slane %v1413, 6
    %v1464 = vrot.slane %v1452, 6
    %v1465 = vrot.slane %v1454, 6
    %v1470 = vadd.f32 %v568, %v1462
    %v1471 = vadd.f32 %v569, %v1463
    %v1472 = vadd.f32 %v570, %v1464
    %v1473 = vadd.f32 %v571, %v1465
    %v1474 = vxor.u32 %v1470, 2147483648
    %v1475 = vxor.u32 %v1471, 2147483648
    %v1476 = vxor.u32 %v1472, 2147483648
    %v1477 = vmul.f32 %v1474, 1.442695
    %v1478 = vpow.pop %v1477
    %v1479 = vmul.f32 %v1475, 1.442695
    %v1480 = vpow.pop %v1479
    %v1481 = vmul.f32 %v1476, 1.442695
    %v1482 = vpow.pop %v1481
    %v1483 = vadd.f32 %v1478, 1.0
    %v1484 = vadd.f32 %v1480, 1.0
    %v1485 = vadd.f32 %v1482, 1.0
    %v1486 = vrcp.pop %v1483
    %v1487 = vmul.f32 1.0, %v1486
    %v1488 = vrcp.pop %v1484
    %v1489 = vmul.f32 1.0, %v1488
    %v1490 = vrcp.pop %v1485
    %v1491 = vmul.f32 1.0, %v1490
    %v1492 = vtanh.pop %v1473
    %v1494 = vrot.slane %v1372, 6
    %v1496 = vmul.f32 %v1489, %v1494
    %v1497 = vmul.f32 %v1487, %v1492
    %v1498 = vadd.f32 %v1496, %v1497
    %v1499 = vtanh.pop %v1498
    %v1500 = vmul.f32 %v1491, %v1499
    %v1501 = vpack.c.bf16 %v1500, %v1500
    %v1503 = vrot.slane %v1501, 1
    %1505 = vmatprep.subr.bf16.mxu0 %v701
    %1506 = vmatpush1.bf16.msra.mxu0 %v700
    %1507 = vmatprep.subr.bf16.mxu0 %v705
    %1508 = vmatpush1.bf16.msra.mxu0 %v704
    %1509 = vmatprep.subr.bf16.mxu0 %v709
    %1510 = vmatpush1.bf16.msra.mxu0 %v708
    %1511 = vmatprep.subr.bf16.mxu0 %v713
    %1512 = vmatpush1.bf16.msra.mxu0 %v712
    %1513 = vmatprep.subr.bf16.mxu0 %v717
    %1514 = vmatpush1.bf16.msra.mxu0 %v716
    %1515 = vmatprep.subr.bf16.mxu0 %v721
    %1516 = vmatpush1.bf16.msra.mxu0 %v720
    %1517 = vmatprep.subr.bf16.mxu0 %v725
    %1518 = vmatpush1.bf16.msra.mxu0 %v724
    %1519 = vmatprep.subr.bf16.mxu0 %v729
    %1520 = vmatpush1.bf16.msra.mxu0 %v728
    %1521 = vmatprep.subr.bf16.mxu0 0
    %1522 = vmatpush1.bf16.msra.mxu0 0
    %1523 = vmatprep.subr.bf16.mxu0 0
    %1524 = vmatpush1.bf16.msra.mxu0 0
    %1525 = vmatprep.subr.bf16.mxu0 0
    %1526 = vmatpush1.bf16.msra.mxu0 0
    %1527 = vmatprep.subr.bf16.mxu0 0
    %1528 = vmatpush1.bf16.msra.mxu0 0
    %1529 = vmatprep.subr.bf16.mxu0 0
    %1530 = vmatpush1.bf16.msra.mxu0 0
    %1531 = vmatprep.subr.bf16.mxu0 0
    %1532 = vmatpush1.bf16.msra.mxu0 0
    %1533 = vmatprep.subr.bf16.mxu0 0
    %1534 = vmatpush1.bf16.msra.mxu0 0
    %1535 = vmatprep.subr.bf16.mxu0 0
    %1536 = vmatpush1.bf16.msra.mxu0 0
    %1537 = vmatprep.mubr.bf16.mxu0 0
    %1538 = vmatmul.mubr.bf16.gmra.mrb[0].mxu0 %v1503
    %v1539 = vpop.f32.mrb[0].mxu0
    %v1540 = vadd.f32 0.0, %v1539
    %v1541 = vpop.f32.mrb[0].mxu0
    %v1542 = vadd.f32 0.0, %v1541
    %v1543 = vpop.f32.mrb[0].mxu0
    %v1544 = vpop.f32.mrb[0].mxu0
    %1545 = vdwg.mxu0
    %1546 = vmatprep.subr.bf16.mxu0 %v703
    %1547 = vmatpush1.bf16.msra.mxu0 %v702
    %1548 = vmatprep.subr.bf16.mxu0 %v707
    %1549 = vmatpush1.bf16.msra.mxu0 %v706
    %1550 = vmatprep.subr.bf16.mxu0 %v711
    %1551 = vmatpush1.bf16.msra.mxu0 %v710
    %1552 = vmatprep.subr.bf16.mxu0 %v715
    %1553 = vmatpush1.bf16.msra.mxu0 %v714
    %1554 = vmatprep.subr.bf16.mxu0 %v719
    %1555 = vmatpush1.bf16.msra.mxu0 %v718
    %1556 = vmatprep.subr.bf16.mxu0 %v723
    %1557 = vmatpush1.bf16.msra.mxu0 %v722
    %1558 = vmatprep.subr.bf16.mxu0 %v727
    %1559 = vmatpush1.bf16.msra.mxu0 %v726
    %1560 = vmatprep.subr.bf16.mxu0 %v731
    %1561 = vmatpush1.bf16.msra.mxu0 %v730
    %1562 = vmatprep.subr.bf16.mxu0 0
    %1563 = vmatpush1.bf16.msra.mxu0 0
    %1564 = vmatprep.subr.bf16.mxu0 0
    %1565 = vmatpush1.bf16.msra.mxu0 0
    %1566 = vmatprep.subr.bf16.mxu0 0
    %1567 = vmatpush1.bf16.msra.mxu0 0
    %1568 = vmatprep.subr.bf16.mxu0 0
    %1569 = vmatpush1.bf16.msra.mxu0 0
    %1570 = vmatprep.subr.bf16.mxu0 0
    %1571 = vmatpush1.bf16.msra.mxu0 0
    %1572 = vmatprep.subr.bf16.mxu0 0
    %1573 = vmatpush1.bf16.msra.mxu0 0
    %1574 = vmatprep.subr.bf16.mxu0 0
    %1575 = vmatpush1.bf16.msra.mxu0 0
    %1576 = vmatprep.subr.bf16.mxu0 0
    %1577 = vmatpush1.bf16.msra.mxu0 0
    %1578 = vmatprep.mubr.bf16.mxu0 0
    %1579 = vmatmul.mubr.bf16.gmra.mrb[0].mxu0 %v1503
    %v1580 = vpop.f32.mrb[0].mxu0
    %v1581 = vadd.f32 0.0, %v1580
    %v1582 = vpop.f32.mrb[0].mxu0
    %v1583 = vadd.f32 0.0, %v1582
    %v1584 = vpop.f32.mrb[0].mxu0
    %v1585 = vpop.f32.mrb[0].mxu0
    %1586 = vdwg.mxu0
    %v1591 = vrot.slane %v1540, 4
    %v1592 = vrot.slane %v1542, 4
    %v1593 = vrot.slane %v1581, 4
    %v1594 = vrot.slane %v1583, 4
    %v1599 = vadd.f32 %v556, %v1591
    %v1600 = vadd.f32 %v557, %v1592
    %v1601 = vadd.f32 %v558, %v1593
    %v1602 = vadd.f32 %v559, %v1594
    %v1603 = vxor.u32 %v1599, 2147483648
    %v1604 = vxor.u32 %v1600, 2147483648
    %v1605 = vxor.u32 %v1601, 2147483648
    %v1606 = vmul.f32 %v1603, 1.442695
    %v1607 = vpow.pop %v1606
    %v1608 = vmul.f32 %v1604, 1.442695
    %v1609 = vpow.pop %v1608
    %v1610 = vmul.f32 %v1605, 1.442695
    %v1611 = vpow.pop %v1610
    %v1612 = vadd.f32 %v1607, 1.0
    %v1613 = vadd.f32 %v1609, 1.0
    %v1614 = vadd.f32 %v1611, 1.0
    %v1615 = vrcp.pop %v1612
    %v1616 = vmul.f32 1.0, %v1615
    %v1617 = vrcp.pop %v1613
    %v1618 = vmul.f32 1.0, %v1617
    %v1619 = vrcp.pop %v1614
    %v1620 = vmul.f32 1.0, %v1619
    %v1621 = vtanh.pop %v1602
    %v1623 = vrot.slane %v1498, 6
    %v1625 = vmul.f32 %v1618, %v1623
    %v1626 = vmul.f32 %v1616, %v1621
    %v1627 = vadd.f32 %v1625, %v1626
    %v1628 = vtanh.pop %v1627
    %v1629 = vmul.f32 %v1620, %v1628
    %v1630 = vpack.c.bf16 %v1629, %v1629
    %v1632 = vrot.slane %v1630, 2
    %1634 = vmatprep.subr.bf16.mxu0 %v701
    %1635 = vmatpush1.bf16.msra.mxu0 %v700
    %1636 = vmatprep.subr.bf16.mxu0 %v705
    %1637 = vmatpush1.bf16.msra.mxu0 %v704
    %1638 = vmatprep.subr.bf16.mxu0 %v709
    %1639 = vmatpush1.bf16.msra.mxu0 %v708
    %1640 = vmatprep.subr.bf16.mxu0 %v713
    %1641 = vmatpush1.bf16.msra.mxu0 %v712
    %1642 = vmatprep.subr.bf16.mxu0 %v717
    %1643 = vmatpush1.bf16.msra.mxu0 %v716
    %1644 = vmatprep.subr.bf16.mxu0 %v721
    %1645 = vmatpush1.bf16.msra.mxu0 %v720
    %1646 = vmatprep.subr.bf16.mxu0 %v725
    %1647 = vmatpush1.bf16.msra.mxu0 %v724
    %1648 = vmatprep.subr.bf16.mxu0 %v729
    %1649 = vmatpush1.bf16.msra.mxu0 %v728
    %1650 = vmatprep.subr.bf16.mxu0 0
    %1651 = vmatpush1.bf16.msra.mxu0 0
    %1652 = vmatprep.subr.bf16.mxu0 0
    %1653 = vmatpush1.bf16.msra.mxu0 0
    %1654 = vmatprep.subr.bf16.mxu0 0
    %1655 = vmatpush1.bf16.msra.mxu0 0
    %1656 = vmatprep.subr.bf16.mxu0 0
    %1657 = vmatpush1.bf16.msra.mxu0 0
    %1658 = vmatprep.subr.bf16.mxu0 0
    %1659 = vmatpush1.bf16.msra.mxu0 0
    %1660 = vmatprep.subr.bf16.mxu0 0
    %1661 = vmatpush1.bf16.msra.mxu0 0
    %1662 = vmatprep.subr.bf16.mxu0 0
    %1663 = vmatpush1.bf16.msra.mxu0 0
    %1664 = vmatprep.subr.bf16.mxu0 0
    %1665 = vmatpush1.bf16.msra.mxu0 0
    %1666 = vmatprep.mubr.bf16.mxu0 0
    %1667 = vmatmul.mubr.bf16.gmra.mrb[0].mxu0 %v1632
    %v1668 = vpop.f32.mrb[0].mxu0
    %v1669 = vadd.f32 0.0, %v1668
    %v1670 = vpop.f32.mrb[0].mxu0
    %v1671 = vadd.f32 0.0, %v1670
    %v1672 = vpop.f32.mrb[0].mxu0
    %v1673 = vpop.f32.mrb[0].mxu0
    %1674 = vdwg.mxu0
    %1675 = vmatprep.subr.bf16.mxu0 %v703
    %1676 = vmatpush1.bf16.msra.mxu0 %v702
    %1677 = vmatprep.subr.bf16.mxu0 %v707
    %1678 = vmatpush1.bf16.msra.mxu0 %v706
    %1679 = vmatprep.subr.bf16.mxu0 %v711
    %1680 = vmatpush1.bf16.msra.mxu0 %v710
    %1681 = vmatprep.subr.bf16.mxu0 %v715
    %1682 = vmatpush1.bf16.msra.mxu0 %v714
    %1683 = vmatprep.subr.bf16.mxu0 %v719
    %1684 = vmatpush1.bf16.msra.mxu0 %v718
    %1685 = vmatprep.subr.bf16.mxu0 %v723
    %1686 = vmatpush1.bf16.msra.mxu0 %v722
    %1687 = vmatprep.subr.bf16.mxu0 %v727
    %1688 = vmatpush1.bf16.msra.mxu0 %v726
    %1689 = vmatprep.subr.bf16.mxu0 %v731
    %1690 = vmatpush1.bf16.msra.mxu0 %v730
    %1691 = vmatprep.subr.bf16.mxu0 0
    %1692 = vmatpush1.bf16.msra.mxu0 0
    %1693 = vmatprep.subr.bf16.mxu0 0
    %1694 = vmatpush1.bf16.msra.mxu0 0
    %1695 = vmatprep.subr.bf16.mxu0 0
    %1696 = vmatpush1.bf16.msra.mxu0 0
    %1697 = vmatprep.subr.bf16.mxu0 0
    %1698 = vmatpush1.bf16.msra.mxu0 0
    %1699 = vmatprep.subr.bf16.mxu0 0
    %1700 = vmatpush1.bf16.msra.mxu0 0
    %1701 = vmatprep.subr.bf16.mxu0 0
    %1702 = vmatpush1.bf16.msra.mxu0 0
    %1703 = vmatprep.subr.bf16.mxu0 0
    %1704 = vmatpush1.bf16.msra.mxu0 0
    %1705 = vmatprep.subr.bf16.mxu0 0
    %1706 = vmatpush1.bf16.msra.mxu0 0
    %1707 = vmatprep.mubr.bf16.mxu0 0
    %1708 = vmatmul.mubr.bf16.gmra.mrb[0].mxu0 %v1632
    %v1709 = vpop.f32.mrb[0].mxu0
    %v1710 = vadd.f32 0.0, %v1709
    %v1711 = vpop.f32.mrb[0].mxu0
    %v1712 = vadd.f32 0.0, %v1711
    %v1713 = vpop.f32.mrb[0].mxu0
    %v1714 = vpop.f32.mrb[0].mxu0
    %1715 = vdwg.mxu0
    %v1720 = vrot.slane %v1669, 2
    %v1721 = vrot.slane %v1671, 2
    %v1722 = vrot.slane %v1710, 2
    %v1723 = vrot.slane %v1712, 2
    %v1728 = vadd.f32 %v568, %v1720
    %v1729 = vadd.f32 %v569, %v1721
    %v1730 = vadd.f32 %v570, %v1722
    %v1731 = vadd.f32 %v571, %v1723
    %v1732 = vxor.u32 %v1728, 2147483648
    %v1733 = vxor.u32 %v1729, 2147483648
    %v1734 = vxor.u32 %v1730, 2147483648
    %v1735 = vmul.f32 %v1732, 1.442695
    %v1736 = vpow.pop %v1735
    %v1737 = vmul.f32 %v1733, 1.442695
    %v1738 = vpow.pop %v1737
    %v1739 = vmul.f32 %v1734, 1.442695
    %v1740 = vpow.pop %v1739
    %v1741 = vadd.f32 %v1736, 1.0
    %v1742 = vadd.f32 %v1738, 1.0
    %v1743 = vadd.f32 %v1740, 1.0
    %v1744 = vrcp.pop %v1741
    %v1745 = vmul.f32 1.0, %v1744
    %v1746 = vrcp.pop %v1742
    %v1747 = vmul.f32 1.0, %v1746
    %v1748 = vrcp.pop %v1743
    %v1749 = vmul.f32 1.0, %v1748
    %v1750 = vtanh.pop %v1731
    %v1752 = vrot.slane %v1627, 6
    %v1754 = vmul.f32 %v1747, %v1752
    %v1755 = vmul.f32 %v1745, %v1750
    %v1756 = vadd.f32 %v1754, %v1755
    %v1757 = vtanh.pop %v1756
    %v1758 = vmul.f32 %v1749, %v1757
    %v1759 = vsel %vm69, %v873, %v999
    %vm1760 = vcmask 1043456
    %v1761 = vsel %vm1760, %v1759, %v1128
    %vm1762 = vcmask 1045504
    %v1763 = vsel %vm1762, %v1761, %v1257
    %v1764 = vsel %vm69, %v1374, %v1500
    %v1765 = vsel %vm1760, %v1764, %v1629
    %v1766 = vsel %vm1762, %v1765, %v1758
    %v1768 = vrot.slane %v1758, 6
    %v1771 = vrot.slane %v1629, 2
    %v1774 = vrot.slane %v1500, 6
    %v1777 = vrot.slane %v1374, 2
    %v1780 = vrot.slane %v1257, 6
    %v1783 = vrot.slane %v1128, 2
    %v1786 = vrot.slane %v999, 6
    %v1789 = vrot.slane %v873, 2
    %v1791 = vsel %vm69, %v1768, %v1771
    %v1792 = vsel %vm1760, %v1791, %v1774
    %v1793 = vsel %vm1762, %v1792, %v1777
    %v1794 = vsel %vm69, %v1780, %v1783
    %v1795 = vsel %vm1760, %v1794, %v1786
    %v1796 = vsel %vm1762, %v1795, %v1789
    %v1797 = vld [vmem:[%s7] sm:$0xff]
    %v1798 = vld [vmem:[%s7 + $0x8] sm:$0xff]
    %v1799 = vld [vmem:[%s7 + $0x10] sm:$0xff]
    %v1800 = vld [vmem:[%s7 + $0x18] sm:$0xff]
    %v1801 = vld [vmem:[%s7 + $0x20] sm:$0xff]
    %v1802 = vld [vmem:[%s7 + $0x28] sm:$0xff]
    %v1803 = vld [vmem:[%s7 + $0x30] sm:$0xff]
    %v1804 = vld [vmem:[%s7 + $0x38] sm:$0xff]
    %v1805 = vld [vmem:[%s7 + $0x40] sm:$0xff]
    %v1806 = vld [vmem:[%s7 + $0x48] sm:$0xff]
    %v1807 = vld [vmem:[%s7 + $0x50] sm:$0xff]
    %v1808 = vld [vmem:[%s7 + $0x58] sm:$0xff]
    %v1809 = vld [vmem:[%s7 + $0x60] sm:$0xff]
    %v1810 = vld [vmem:[%s7 + $0x68] sm:$0xff]
    %v1811 = vld [vmem:[%s7 + $0x70] sm:$0xff]
    %v1812 = vld [vmem:[%s7 + $0x78] sm:$0xff]
    %v1813 = vld [vmem:[%s8] sm:$0xff]
    %v1814 = vld [vmem:[%s8 + $0x8] sm:$0xff]
    %v1815 = vld [vmem:[%s8 + $0x10] sm:$0xff]
    %v1816 = vld [vmem:[%s8 + $0x18] sm:$0xff]
    %v1817 = vld [vmem:[%s8 + $0x20] sm:$0xff]
    %v1818 = vld [vmem:[%s8 + $0x28] sm:$0xff]
    %v1819 = vld [vmem:[%s8 + $0x30] sm:$0xff]
    %v1820 = vld [vmem:[%s8 + $0x38] sm:$0xff]
    %v1821 = vld [vmem:[%s8 + $0x40] sm:$0xff]
    %v1822 = vld [vmem:[%s8 + $0x48] sm:$0xff]
    %v1823 = vld [vmem:[%s8 + $0x50] sm:$0xff]
    %v1824 = vld [vmem:[%s8 + $0x58] sm:$0xff]
    %v1825 = vld [vmem:[%s8 + $0x60] sm:$0xff]
    %v1826 = vld [vmem:[%s8 + $0x68] sm:$0xff]
    %v1827 = vld [vmem:[%s8 + $0x70] sm:$0xff]
    %v1828 = vld [vmem:[%s8 + $0x78] sm:$0xff]
    %1829 = vmatprep.subr.mxu0 0.0
    %1830 = vmatpush1.msra.mxu0 %v1813
    %1831 = vmatprep.subr.mxu0 0.0
    %1832 = vmatpush1.msra.mxu0 %v1814
    %1833 = vmatprep.subr.mxu0 0.0
    %1834 = vmatpush1.msra.mxu0 %v1815
    %1835 = vmatprep.subr.mxu0 0.0
    %1836 = vmatpush1.msra.mxu0 %v1816
    %1837 = vmatprep.subr.mxu0 0.0
    %1838 = vmatpush1.msra.mxu0 %v1817
    %1839 = vmatprep.subr.mxu0 0.0
    %1840 = vmatpush1.msra.mxu0 %v1818
    %1841 = vmatprep.subr.mxu0 0.0
    %1842 = vmatpush1.msra.mxu0 %v1819
    %1843 = vmatprep.subr.mxu0 0.0
    %1844 = vmatpush1.msra.mxu0 %v1820
    %1845 = vmatprep.subr.mxu0 0.0
    %1846 = vmatpush1.msra.mxu0 %v1821
    %1847 = vmatprep.subr.mxu0 0.0
    %1848 = vmatpush1.msra.mxu0 %v1822
    %1849 = vmatprep.subr.mxu0 0.0
    %1850 = vmatpush1.msra.mxu0 %v1823
    %1851 = vmatprep.subr.mxu0 0.0
    %1852 = vmatpush1.msra.mxu0 %v1824
    %1853 = vmatprep.subr.mxu0 0.0
    %1854 = vmatpush1.msra.mxu0 %v1825
    %1855 = vmatprep.subr.mxu0 0.0
    %1856 = vmatpush1.msra.mxu0 %v1826
    %1857 = vmatprep.subr.mxu0 0.0
    %1858 = vmatpush1.msra.mxu0 %v1827
    %1859 = vmatprep.subr.mxu0 0.0
    %1860 = vmatpush1.msra.mxu0 %v1828
    %1861 = vmatprep.subr.mxu0 0.0
    %1862 = vmatpush1.msra.mxu0 0.0
    %1863 = vmatprep.subr.mxu0 0.0
    %1864 = vmatpush1.msra.mxu0 0.0
    %1865 = vmatprep.subr.mxu0 0.0
    %1866 = vmatpush1.msra.mxu0 0.0
    %1867 = vmatprep.subr.mxu0 0.0
    %1868 = vmatpush1.msra.mxu0 0.0
    %1869 = vmatprep.subr.mxu0 0.0
    %1870 = vmatpush1.msra.mxu0 0.0
    %1871 = vmatprep.subr.mxu0 0.0
    %1872 = vmatpush1.msra.mxu0 0.0
    %1873 = vmatprep.subr.mxu0 0.0
    %1874 = vmatpush1.msra.mxu0 0.0
    %1875 = vmatprep.subr.mxu0 0.0
    %1876 = vmatpush1.msra.mxu0 0.0
    %1877 = vmatprep.subr.mxu0 0.0
    %1878 = vmatpush1.msra.mxu0 0.0
    %1879 = vmatprep.subr.mxu0 0.0
    %1880 = vmatpush1.msra.mxu0 0.0
    %1881 = vmatprep.subr.mxu0 0.0
    %1882 = vmatpush1.msra.mxu0 0.0
    %1883 = vmatprep.subr.mxu0 0.0
    %1884 = vmatpush1.msra.mxu0 0.0
    %1885 = vmatprep.subr.mxu0 0.0
    %1886 = vmatpush1.msra.mxu0 0.0
    %1887 = vmatprep.subr.mxu0 0.0
    %1888 = vmatpush1.msra.mxu0 0.0
    %1889 = vmatprep.subr.mxu0 0.0
    %1890 = vmatpush1.msra.mxu0 0.0
    %1891 = vmatprep.subr.mxu0 0.0
    %1892 = vmatpush1.msra.mxu0 0.0
    %1893 = vmatprep.mubr.f32.mxu0 0.0
    %1894 = vmatmul.mubr.f32.gmra.mrb[0].mxu0 %v1793
    %v1895 = vpop.f32.mrb[0].mxu0
    %v1896 = vadd.f32 0.0, %v1895
    %v1897 = vpop.f32.mrb[0].mxu0
    %1898 = vmatprep.mubr.f32.mxu0 0.0
    %1899 = vmatmul.mubr.f32.gmra.mrb[0].mxu0 %v1796
    %v1900 = vpop.f32.mrb[0].mxu0
    %v1901 = vadd.f32 0.0, %v1900
    %v1902 = vpop.f32.mrb[0].mxu0
    %1903 = vdwg.mxu0
    %1904 = vmatprep.subr.mxu0 0.0
    %1905 = vmatpush1.msra.mxu0 %v1797
    %1906 = vmatprep.subr.mxu0 0.0
    %1907 = vmatpush1.msra.mxu0 %v1798
    %1908 = vmatprep.subr.mxu0 0.0
    %1909 = vmatpush1.msra.mxu0 %v1799
    %1910 = vmatprep.subr.mxu0 0.0
    %1911 = vmatpush1.msra.mxu0 %v1800
    %1912 = vmatprep.subr.mxu0 0.0
    %1913 = vmatpush1.msra.mxu0 %v1801
    %1914 = vmatprep.subr.mxu0 0.0
    %1915 = vmatpush1.msra.mxu0 %v1802
    %1916 = vmatprep.subr.mxu0 0.0
    %1917 = vmatpush1.msra.mxu0 %v1803
    %1918 = vmatprep.subr.mxu0 0.0
    %1919 = vmatpush1.msra.mxu0 %v1804
    %1920 = vmatprep.subr.mxu0 0.0
    %1921 = vmatpush1.msra.mxu0 %v1805
    %1922 = vmatprep.subr.mxu0 0.0
    %1923 = vmatpush1.msra.mxu0 %v1806
    %1924 = vmatprep.subr.mxu0 0.0
    %1925 = vmatpush1.msra.mxu0 %v1807
    %1926 = vmatprep.subr.mxu0 0.0
    %1927 = vmatpush1.msra.mxu0 %v1808
    %1928 = vmatprep.subr.mxu0 0.0
    %1929 = vmatpush1.msra.mxu0 %v1809
    %1930 = vmatprep.subr.mxu0 0.0
    %1931 = vmatpush1.msra.mxu0 %v1810
    %1932 = vmatprep.subr.mxu0 0.0
    %1933 = vmatpush1.msra.mxu0 %v1811
    %1934 = vmatprep.subr.mxu0 0.0
    %1935 = vmatpush1.msra.mxu0 %v1812
    %1936 = vmatprep.subr.mxu0 0.0
    %1937 = vmatpush1.msra.mxu0 0.0
    %1938 = vmatprep.subr.mxu0 0.0
    %1939 = vmatpush1.msra.mxu0 0.0
    %1940 = vmatprep.subr.mxu0 0.0
    %1941 = vmatpush1.msra.mxu0 0.0
    %1942 = vmatprep.subr.mxu0 0.0
    %1943 = vmatpush1.msra.mxu0 0.0
    %1944 = vmatprep.subr.mxu0 0.0
    %1945 = vmatpush1.msra.mxu0 0.0
    %1946 = vmatprep.subr.mxu0 0.0
    %1947 = vmatpush1.msra.mxu0 0.0
    %1948 = vmatprep.subr.mxu0 0.0
    %1949 = vmatpush1.msra.mxu0 0.0
    %1950 = vmatprep.subr.mxu0 0.0
    %1951 = vmatpush1.msra.mxu0 0.0
    %1952 = vmatprep.subr.mxu0 0.0
    %1953 = vmatpush1.msra.mxu0 0.0
    %1954 = vmatprep.subr.mxu0 0.0
    %1955 = vmatpush1.msra.mxu0 0.0
    %1956 = vmatprep.subr.mxu0 0.0
    %1957 = vmatpush1.msra.mxu0 0.0
    %1958 = vmatprep.subr.mxu0 0.0
    %1959 = vmatpush1.msra.mxu0 0.0
    %1960 = vmatprep.subr.mxu0 0.0
    %1961 = vmatpush1.msra.mxu0 0.0
    %1962 = vmatprep.subr.mxu0 0.0
    %1963 = vmatpush1.msra.mxu0 0.0
    %1964 = vmatprep.subr.mxu0 0.0
    %1965 = vmatpush1.msra.mxu0 0.0
    %1966 = vmatprep.subr.mxu0 0.0
    %1967 = vmatpush1.msra.mxu0 0.0
    %1968 = vmatprep.mubr.f32.mxu0 0.0
    %1969 = vmatmul.mubr.f32.gmra.mrb[0].mxu0 %v1763
    %v1970 = vpop.f32.mrb[0].mxu0
    %v1971 = vadd.f32 %v1896, %v1970
    %v1972 = vpop.f32.mrb[0].mxu0
    %1973 = vmatprep.mubr.f32.mxu0 0.0
    %1974 = vmatmul.mubr.f32.gmra.mrb[0].mxu0 %v1766
    %v1975 = vpop.f32.mrb[0].mxu0
    %v1976 = vadd.f32 %v1901, %v1975
    %v1977 = vpop.f32.mrb[0].mxu0
    %1978 = vdwg.mxu0
    %v1979 = vld [vmem:[%s9] sm:$0x1]
    %v1981 = vlaneseq
    %v1982 = vshrl.u32 %v1981, 7
    %v1983 = vsub.s32 0, %v1982
    %v1984 = vrot.slane %v1979, %v1983
    %v1986 = vadd.f32 %v1971, %v1984
    %v1987 = vadd.f32 %v1976, %v1984
    %vm1988 = vcmask 23552
    %v1989 = vsel %vm1988, %v1986, -inf
    %1990 = vmax.xlane.f32.xlu0 %v1989
    %v1991 = vpop.xlane.xlu0 %1990
    %v1992 = vsel %vm1988, %v1987, -inf
    %1993 = vmax.xlane.f32.xlu0 %v1992
    %v1994 = vpop.xlane.xlu0 %1993
    %v1995 = vsub.f32 %v1986, %v1991
    %v1996 = vsub.f32 %v1987, %v1994
    %v1997 = vmul.f32 %v1995, 1.442695
    %v1998 = vpow.pop %v1997
    %v1999 = vmul.f32 %v1996, 1.442695
    %v2000 = vpow.pop %v1999
    %v2001 = vsel %vm1988, %v1998, 0.0
    %2002 = vadd.xlane.f32.xlu0 %v2001
    %v2003 = vpop.xlane.xlu0 %2002
    %v2004 = vsel %vm1988, %v2000, 0.0
    %2005 = vadd.xlane.f32.xlu0 %v2004
    %v2006 = vpop.xlane.xlu0 %2005
    %v2007 = vlog2.pop %v2003
    %v2008 = vmul.f32 %v2007, 0.6931472
    %v2009 = vlog2.pop %v2006
    %v2010 = vmul.f32 %v2009, 0.6931472
    %v2011 = vsub.f32 %v1995, %v2008
    %v2012 = vsub.f32 %v1996, %v2010
    %2013 = vst.msk [vmem:[%s11] sm:$0xff] %vm1988, %v2011
    %2014 = vst.msk [vmem:[%s11 + $0x8] sm:$0xff] %vm1988, %v2012
    // Predicated region
    $region42: #{model_forward.1} parent=1 // pred_check
      _
    $region43: #{model_forward.1} parent=1 // pred_check_branch
      %2016 = sbr.rel (0) target = $region45
    $region44: #{model_forward.1} parent=1 // pred_region
      %s2018 = ssub.s32 32, 32
      %2019 = vsyncadd [#allocation3], %s2018
      %s2021 = sshll.u32 [#allocation2], 4
      %s2022 = int_to_ptr.vmem [resolvable:$true] %s2021
      %2024 = dma.vmem_to_hbm [thread:$0]  %s2022, 32, %s10, [#allocation3]
    $region45: #{model_forward.1} parent=1 // pred_fallthru
      _
    // Predicated region
    $region46: #{model_forward.1} parent=1 // pred_check
      _
    $region47: #{model_forward.1} parent=1 // pred_check_branch
      %2026 = sbr.rel (0) target = $region49
    $region48: #{model_forward.1} parent=1 // pred_region
      _
    $region49: #{model_forward.1} parent=1 // pred_fallthru
      _
    // Predicated region
    $region50: #{model_forward.1} parent=1 // pred_check
      _
    $region51: #{model_forward.1} parent=1 // pred_check_branch
      %2028 = sbr.rel (0) target = $region53
    $region52: #{model_forward.1} parent=1 // pred_region
      %2029 = dma.done [#allocation3], 32
    $region53: #{model_forward.1} parent=1 // pred_fallthru
      _
    // Predicated region
    $region54: #{model_forward.1} parent=1 // pred_check
      _
    $region55: #{model_forward.1} parent=1 // pred_check_branch
      %2031 = sbr.rel (0) target = $region57
    $region56: #{model_forward.1} parent=1 // pred_region
      _
    $region57: #{model_forward.1} parent=1 // pred_fallthru
      _
    %2032 = vsyncpa [#allocation3], 1

</llo_original>
